<compile_context>
chip_gen: v7x
topology: tpu7x:2x2x1
jax: 0.10.0
libtpu: 0.0.40
codegen_flags: <defaults>
</compile_context>

<pallas_src>
import functools

import jax
import jax.numpy as jnp
from jax.experimental import pallas as pl
from jax.experimental.pallas import tpu as pltpu


def _deconv_block_kernel(p_ref, x_ref, o_ref, *, taps, nhw, eps):
    """Single invocation: all groups at once.

    p_ref : VMEM (taps+2, G, 1)  rows [0:taps] = spatially-flipped conv-transpose weights,
                                 row  [taps]   = BN gamma, row [taps+1] = BN beta
    x_ref : VMEM (taps, G, nhw)  pre-shifted (im2col) input taps, lane-dense
    o_ref : VMEM (G, nhw)        output channels (== groups), lane-dense
    """
    # --- grouped transposed conv (correlation form), unrolled taps: broadcast-FMAs on the VPU ---
    acc = x_ref[0].astype(jnp.float32) * p_ref[0].astype(jnp.float32)
    for i in range(1, taps):
        acc = acc + x_ref[i].astype(jnp.float32) * p_ref[i].astype(jnp.float32)
    # NOTE: the ConvTranspose2d bias is intentionally omitted: training-mode BatchNorm subtracts the
    # per-group mean, so a per-group constant cancels exactly in (acc - mean) and in the variance.

    # --- BatchNorm2d, training mode: per-group (sublane row) batch statistics over the nhw lanes,
    # biased variance, two-pass (centered) second moment for f32 conditioning ---
    inv_cnt = jnp.float32(1.0 / nhw)
    mean = jnp.sum(acc, axis=-1, keepdims=True) * inv_cnt
    centered = acc - mean
    var = jnp.sum(centered * centered, axis=-1, keepdims=True) * inv_cnt
    scale = jax.lax.rsqrt(var + jnp.float32(eps)) * p_ref[taps].astype(jnp.float32)
    y = centered * scale + p_ref[taps + 1].astype(jnp.float32)

    # --- ReLU + lane-dense store ---
    o_ref[...] = jnp.maximum(y, jnp.float32(0.0)).astype(o_ref.dtype)


@functools.partial(jax.jit,
                   static_argnames=("kernel_size", "stride", "padding", "groups", "eps"))
def deconv_block(x, weight, bias, gamma, beta, *, kernel_size=3, stride=1,
                 padding=1, groups=17, eps=1e-5):
    """Pallas implementation of DeconvBlock.forward (training-mode BatchNorm).

    x      : (N, Cin, H, W)               float32, NCHW
    weight : (Cin, Cout//groups, kH, kW)  ConvTranspose2d weight (PyTorch layout)
    bias   : (Cout,)                      ConvTranspose2d bias (mathematical no-op under training BN)
    gamma  : (Cout,)                      BatchNorm2d weight  (Cout must equal groups)
    beta   : (Cout,)                      BatchNorm2d bias
    """
    del bias  # cancels exactly under training-mode BatchNorm (mean subtraction)

    N, Cin, H, W = x.shape
    Cin_w, opg, kH, kW = weight.shape
    assert Cin_w == Cin and kH == kernel_size and kW == kernel_size
    assert Cin % groups == 0
    ipg = Cin // groups
    Cout = groups * opg
    # BatchNorm2d(num_features=groups) only runs if the conv output has `groups` channels.
    assert Cout == groups and opg == 1, "BatchNorm2d(groups) requires out_channels == groups"
    assert stride == 1  # TODO(synk): stride > 1 not implemented
    p_eq = kH - 1 - padding
    assert p_eq >= 0

    Hout = (H - 1) * stride - 2 * padding + kH
    Wout = (W - 1) * stride - 2 * padding + kW

    taps = ipg * kH * kW            # 18 here
    nhw = N * Hout * Wout           # 512 here -> lane-dense (multiple of 128)

    # ---------------- wrapper-side layout prep (lane-dense, minimal copies) ----------------
    # One small channel transpose on raw x, one spatial pad, one stack of shifted windows
    # already in taps-major order; the final reshape is contiguous (free).
    xg = x.reshape(N, groups, ipg, H, W)
    xg = jnp.transpose(xg, (2, 1, 0, 3, 4))                              # (ipg, G, N, H, W)
    xp = jnp.pad(xg, ((0, 0), (0, 0), (0, 0), (p_eq, p_eq), (p_eq, p_eq)))
    xt = jnp.stack([xp[..., ky:ky + Hout, kx:kx + Wout]
                    for ky in range(kH) for kx in range(kW)], axis=1)    # (ipg, kHkW, G, N, Hout, Wout)
    xt = xt.reshape(taps, groups, nhw)                                   # tap index i = ci*kHkW + t

    # Merge all tiny per-group parameters into ONE array: flipped weights, BN gamma, BN beta.
    wf = weight[:, 0, ::-1, ::-1].reshape(groups, ipg, kH * kW)          # flip -> correlation weights
    wf = jnp.transpose(wf, (1, 2, 0)).reshape(taps, groups)              # (taps, G), i = ci*kHkW + t
    params = jnp.concatenate(
        [wf.astype(jnp.float32),
         gamma.astype(jnp.float32)[None, :],
         beta.astype(jnp.float32)[None, :]], axis=0)[..., None]          # (taps+2, G, 1)

    kernel = functools.partial(_deconv_block_kernel, taps=taps, nhw=nhw, eps=eps)

    out = pl.pallas_call(
        kernel,
        out_shape=jax.ShapeDtypeStruct((groups, nhw), x.dtype),
        grid=(1,),
        in_specs=[
            pl.BlockSpec((taps + 2, groups, 1), lambda i: (0, 0, 0)),    # merged per-group params
            pl.BlockSpec((taps, groups, nhw), lambda i: (0, 0, 0)),      # pre-shifted input taps
        ],
        out_specs=pl.BlockSpec((groups, nhw), lambda i: (0, 0)),
        compiler_params=pltpu.CompilerParams(dimension_semantics=("arbitrary",)),
    )(params, xt)

    # (G, nhw) -> (G, N, Hout, Wout) -> (N, G, Hout, Wout)
    # TODO(synk): if the downstream consumer is layout-agnostic, hand off (G, N, H, W) directly.
    out = out.reshape(groups, N, Hout, Wout)
    return jnp.transpose(out, (1, 0, 2, 3))


def _reference(x, weight, bias, gamma, beta, *, padding, groups, eps=1e-5):
    """Pure-JAX reference: ConvTranspose2d(stride=1) -> BN(training) -> ReLU."""
    N, Cin, H, W = x.shape
    _, opg, kH, kW = weight.shape
    ipg = Cin // groups
    Cout = groups * opg
    wf = weight[:, :, ::-1, ::-1]                                     # (Cin, opg, kH, kW)
    w_conv = wf.reshape(groups, ipg, opg, kH, kW)
    w_conv = jnp.transpose(w_conv, (0, 2, 1, 3, 4)).reshape(Cout, ipg, kH, kW)
    p_eq = kH - 1 - padding
    y = jax.lax.conv_general_dilated(
        x, w_conv, window_strides=(1, 1),
        padding=[(p_eq, p_eq), (p_eq, p_eq)],
        feature_group_count=groups,
        dimension_numbers=("NCHW", "OIHW", "NCHW"),
        precision=jax.lax.Precision.HIGHEST)
    y = y + bias[None, :, None, None]
    mean = y.mean(axis=(0, 2, 3), keepdims=True)
    var = ((y - mean) ** 2).mean(axis=(0, 2, 3), keepdims=True)
    y = (y - mean) * jax.lax.rsqrt(var + eps)
    y = y * gamma[None, :, None, None] + beta[None, :, None, None]
    return jnp.maximum(y, 0.0)


if __name__ == "__main__":
    groups = 17
    in_channels = 34            # 2 input channels per group
    out_channels = 17           # must equal groups for BatchNorm2d(num_features=groups)
    kernel_size, stride, padding = 3, 1, 1
    N, H, W = 2, 16, 16

    key = jax.random.PRNGKey(0)
    k1, k2, k3, k4, k5 = jax.random.split(key, 5)
    x = jax.random.normal(k1, (N, in_channels, H, W), jnp.float32)
    weight = 0.1 * jax.random.normal(
        k2, (in_channels, out_channels // groups, kernel_size, kernel_size), jnp.float32)
    bias = 0.1 * jax.random.normal(k3, (out_channels,), jnp.float32)
    gamma = 1.0 + 0.1 * jax.random.normal(k4, (out_channels,), jnp.float32)
    beta = 0.1 * jax.random.normal(k5, (out_channels,), jnp.float32)

    out = deconv_block(x, weight, bias, gamma, beta,
                       kernel_size=kernel_size, stride=stride,
                       padding=padding, groups=groups)
    out = jax.block_until_ready(out)

    ref = _reference(x, weight, bias, gamma, beta, padding=padding, groups=groups)
    assert out.shape == (N, out_channels, H, W), out.shape
    assert jnp.allclose(out, ref, atol=1e-4, rtol=1e-4), float(jnp.max(jnp.abs(out - ref)))

    print("KERNEL_OK")
</pallas_src>

<mosaic_0001>
module attributes {stable_mosaic.version = 11 : i64} {
  func.func @_deconv_block_kernel(%arg0: i32, %arg1: memref<20x17x1xf32, #tpu.memory_space<vmem>>, %arg2: memref<18x17x512xf32, #tpu.memory_space<vmem>>, %arg3: memref<17x512xf32, #tpu.memory_space<vmem>>) attributes {dimension_semantics = [#tpu.dimension_semantics<arbitrary>], iteration_bounds = array<i64: 1>, scalar_prefetch = 0 : i64, scratch_operands = 0 : i64, tpu.core_type = #tpu.core_type<tc>, window_params = [{pipeline_mode = #tpu.pipeline_mode<synchronous>, transform_indices = @transform_0, window_bounds = array<i64: 20, 17, 1>}, {pipeline_mode = #tpu.pipeline_mode<synchronous>, transform_indices = @transform_1, window_bounds = array<i64: 18, 17, 512>}, {pipeline_mode = #tpu.pipeline_mode<synchronous>, transform_indices = @transform_2, window_bounds = array<i64: 17, 512>}]} {
    %c0 = arith.constant 0 : index
    %c0_0 = arith.constant 0 : index
    %c0_1 = arith.constant 0 : index
    %0 = vector.load %arg2[%c0, %c0_0, %c0_1] : memref<18x17x512xf32, #tpu.memory_space<vmem>>, vector<1x17x512xf32>
    %1 = vector.shape_cast %0 : vector<1x17x512xf32> to vector<17x512xf32>
    %c0_2 = arith.constant 0 : index
    %c0_3 = arith.constant 0 : index
    %c0_4 = arith.constant 0 : index
    %2 = vector.load %arg1[%c0_2, %c0_3, %c0_4] : memref<20x17x1xf32, #tpu.memory_space<vmem>>, vector<1x17x1xf32>
    %3 = vector.shape_cast %2 : vector<1x17x1xf32> to vector<17x1xf32>
    %4 = vector.broadcast %3 : vector<17x1xf32> to vector<17x512xf32>
    %5 = arith.mulf %1, %4 : vector<17x512xf32>
    %c1 = arith.constant 1 : index
    %c0_5 = arith.constant 0 : index
    %c0_6 = arith.constant 0 : index
    %6 = vector.load %arg2[%c1, %c0_5, %c0_6] : memref<18x17x512xf32, #tpu.memory_space<vmem>>, vector<1x17x512xf32>
    %7 = vector.shape_cast %6 : vector<1x17x512xf32> to vector<17x512xf32>
    %c1_7 = arith.constant 1 : index
    %c0_8 = arith.constant 0 : index
    %c0_9 = arith.constant 0 : index
    %8 = vector.load %arg1[%c1_7, %c0_8, %c0_9] : memref<20x17x1xf32, #tpu.memory_space<vmem>>, vector<1x17x1xf32>
    %9 = vector.shape_cast %8 : vector<1x17x1xf32> to vector<17x1xf32>
    %10 = vector.broadcast %9 : vector<17x1xf32> to vector<17x512xf32>
    %11 = arith.mulf %7, %10 : vector<17x512xf32>
    %12 = arith.addf %5, %11 : vector<17x512xf32>
    %c2 = arith.constant 2 : index
    %c0_10 = arith.constant 0 : index
    %c0_11 = arith.constant 0 : index
    %13 = vector.load %arg2[%c2, %c0_10, %c0_11] : memref<18x17x512xf32, #tpu.memory_space<vmem>>, vector<1x17x512xf32>
    %14 = vector.shape_cast %13 : vector<1x17x512xf32> to vector<17x512xf32>
    %c2_12 = arith.constant 2 : index
    %c0_13 = arith.constant 0 : index
    %c0_14 = arith.constant 0 : index
    %15 = vector.load %arg1[%c2_12, %c0_13, %c0_14] : memref<20x17x1xf32, #tpu.memory_space<vmem>>, vector<1x17x1xf32>
    %16 = vector.shape_cast %15 : vector<1x17x1xf32> to vector<17x1xf32>
    %17 = vector.broadcast %16 : vector<17x1xf32> to vector<17x512xf32>
    %18 = arith.mulf %14, %17 : vector<17x512xf32>
    %19 = arith.addf %12, %18 : vector<17x512xf32>
    %c3 = arith.constant 3 : index
    %c0_15 = arith.constant 0 : index
    %c0_16 = arith.constant 0 : index
    %20 = vector.load %arg2[%c3, %c0_15, %c0_16] : memref<18x17x512xf32, #tpu.memory_space<vmem>>, vector<1x17x512xf32>
    %21 = vector.shape_cast %20 : vector<1x17x512xf32> to vector<17x512xf32>
    %c3_17 = arith.constant 3 : index
    %c0_18 = arith.constant 0 : index
    %c0_19 = arith.constant 0 : index
    %22 = vector.load %arg1[%c3_17, %c0_18, %c0_19] : memref<20x17x1xf32, #tpu.memory_space<vmem>>, vector<1x17x1xf32>
    %23 = vector.shape_cast %22 : vector<1x17x1xf32> to vector<17x1xf32>
    %24 = vector.broadcast %23 : vector<17x1xf32> to vector<17x512xf32>
    %25 = arith.mulf %21, %24 : vector<17x512xf32>
    %26 = arith.addf %19, %25 : vector<17x512xf32>
    %c4 = arith.constant 4 : index
    %c0_20 = arith.constant 0 : index
    %c0_21 = arith.constant 0 : index
    %27 = vector.load %arg2[%c4, %c0_20, %c0_21] : memref<18x17x512xf32, #tpu.memory_space<vmem>>, vector<1x17x512xf32>
    %28 = vector.shape_cast %27 : vector<1x17x512xf32> to vector<17x512xf32>
    %c4_22 = arith.constant 4 : index
    %c0_23 = arith.constant 0 : index
    %c0_24 = arith.constant 0 : index
    %29 = vector.load %arg1[%c4_22, %c0_23, %c0_24] : memref<20x17x1xf32, #tpu.memory_space<vmem>>, vector<1x17x1xf32>
    %30 = vector.shape_cast %29 : vector<1x17x1xf32> to vector<17x1xf32>
    %31 = vector.broadcast %30 : vector<17x1xf32> to vector<17x512xf32>
    %32 = arith.mulf %28, %31 : vector<17x512xf32>
    %33 = arith.addf %26, %32 : vector<17x512xf32>
    %c5 = arith.constant 5 : index
    %c0_25 = arith.constant 0 : index
    %c0_26 = arith.constant 0 : index
    %34 = vector.load %arg2[%c5, %c0_25, %c0_26] : memref<18x17x512xf32, #tpu.memory_space<vmem>>, vector<1x17x512xf32>
    %35 = vector.shape_cast %34 : vector<1x17x512xf32> to vector<17x512xf32>
    %c5_27 = arith.constant 5 : index
    %c0_28 = arith.constant 0 : index
    %c0_29 = arith.constant 0 : index
    %36 = vector.load %arg1[%c5_27, %c0_28, %c0_29] : memref<20x17x1xf32, #tpu.memory_space<vmem>>, vector<1x17x1xf32>
    %37 = vector.shape_cast %36 : vector<1x17x1xf32> to vector<17x1xf32>
    %38 = vector.broadcast %37 : vector<17x1xf32> to vector<17x512xf32>
    %39 = arith.mulf %35, %38 : vector<17x512xf32>
    %40 = arith.addf %33, %39 : vector<17x512xf32>
    %c6 = arith.constant 6 : index
    %c0_30 = arith.constant 0 : index
    %c0_31 = arith.constant 0 : index
    %41 = vector.load %arg2[%c6, %c0_30, %c0_31] : memref<18x17x512xf32, #tpu.memory_space<vmem>>, vector<1x17x512xf32>
    %42 = vector.shape_cast %41 : vector<1x17x512xf32> to vector<17x512xf32>
    %c6_32 = arith.constant 6 : index
    %c0_33 = arith.constant 0 : index
    %c0_34 = arith.constant 0 : index
    %43 = vector.load %arg1[%c6_32, %c0_33, %c0_34] : memref<20x17x1xf32, #tpu.memory_space<vmem>>, vector<1x17x1xf32>
    %44 = vector.shape_cast %43 : vector<1x17x1xf32> to vector<17x1xf32>
    %45 = vector.broadcast %44 : vector<17x1xf32> to vector<17x512xf32>
    %46 = arith.mulf %42, %45 : vector<17x512xf32>
    %47 = arith.addf %40, %46 : vector<17x512xf32>
    %c7 = arith.constant 7 : index
    %c0_35 = arith.constant 0 : index
    %c0_36 = arith.constant 0 : index
    %48 = vector.load %arg2[%c7, %c0_35, %c0_36] : memref<18x17x512xf32, #tpu.memory_space<vmem>>, vector<1x17x512xf32>
    %49 = vector.shape_cast %48 : vector<1x17x512xf32> to vector<17x512xf32>
    %c7_37 = arith.constant 7 : index
    %c0_38 = arith.constant 0 : index
    %c0_39 = arith.constant 0 : index
    %50 = vector.load %arg1[%c7_37, %c0_38, %c0_39] : memref<20x17x1xf32, #tpu.memory_space<vmem>>, vector<1x17x1xf32>
    %51 = vector.shape_cast %50 : vector<1x17x1xf32> to vector<17x1xf32>
    %52 = vector.broadcast %51 : vector<17x1xf32> to vector<17x512xf32>
    %53 = arith.mulf %49, %52 : vector<17x512xf32>
    %54 = arith.addf %47, %53 : vector<17x512xf32>
    %c8 = arith.constant 8 : index
    %c0_40 = arith.constant 0 : index
    %c0_41 = arith.constant 0 : index
    %55 = vector.load %arg2[%c8, %c0_40, %c0_41] : memref<18x17x512xf32, #tpu.memory_space<vmem>>, vector<1x17x512xf32>
    %56 = vector.shape_cast %55 : vector<1x17x512xf32> to vector<17x512xf32>
    %c8_42 = arith.constant 8 : index
    %c0_43 = arith.constant 0 : index
    %c0_44 = arith.constant 0 : index
    %57 = vector.load %arg1[%c8_42, %c0_43, %c0_44] : memref<20x17x1xf32, #tpu.memory_space<vmem>>, vector<1x17x1xf32>
    %58 = vector.shape_cast %57 : vector<1x17x1xf32> to vector<17x1xf32>
    %59 = vector.broadcast %58 : vector<17x1xf32> to vector<17x512xf32>
    %60 = arith.mulf %56, %59 : vector<17x512xf32>
    %61 = arith.addf %54, %60 : vector<17x512xf32>
    %c9 = arith.constant 9 : index
    %c0_45 = arith.constant 0 : index
    %c0_46 = arith.constant 0 : index
    %62 = vector.load %arg2[%c9, %c0_45, %c0_46] : memref<18x17x512xf32, #tpu.memory_space<vmem>>, vector<1x17x512xf32>
    %63 = vector.shape_cast %62 : vector<1x17x512xf32> to vector<17x512xf32>
    %c9_47 = arith.constant 9 : index
    %c0_48 = arith.constant 0 : index
    %c0_49 = arith.constant 0 : index
    %64 = vector.load %arg1[%c9_47, %c0_48, %c0_49] : memref<20x17x1xf32, #tpu.memory_space<vmem>>, vector<1x17x1xf32>
    %65 = vector.shape_cast %64 : vector<1x17x1xf32> to vector<17x1xf32>
    %66 = vector.broadcast %65 : vector<17x1xf32> to vector<17x512xf32>
    %67 = arith.mulf %63, %66 : vector<17x512xf32>
    %68 = arith.addf %61, %67 : vector<17x512xf32>
    %c10 = arith.constant 10 : index
    %c0_50 = arith.constant 0 : index
    %c0_51 = arith.constant 0 : index
    %69 = vector.load %arg2[%c10, %c0_50, %c0_51] : memref<18x17x512xf32, #tpu.memory_space<vmem>>, vector<1x17x512xf32>
    %70 = vector.shape_cast %69 : vector<1x17x512xf32> to vector<17x512xf32>
    %c10_52 = arith.constant 10 : index
    %c0_53 = arith.constant 0 : index
    %c0_54 = arith.constant 0 : index
    %71 = vector.load %arg1[%c10_52, %c0_53, %c0_54] : memref<20x17x1xf32, #tpu.memory_space<vmem>>, vector<1x17x1xf32>
    %72 = vector.shape_cast %71 : vector<1x17x1xf32> to vector<17x1xf32>
    %73 = vector.broadcast %72 : vector<17x1xf32> to vector<17x512xf32>
    %74 = arith.mulf %70, %73 : vector<17x512xf32>
    %75 = arith.addf %68, %74 : vector<17x512xf32>
    %c11 = arith.constant 11 : index
    %c0_55 = arith.constant 0 : index
    %c0_56 = arith.constant 0 : index
    %76 = vector.load %arg2[%c11, %c0_55, %c0_56] : memref<18x17x512xf32, #tpu.memory_space<vmem>>, vector<1x17x512xf32>
    %77 = vector.shape_cast %76 : vector<1x17x512xf32> to vector<17x512xf32>
    %c11_57 = arith.constant 11 : index
    %c0_58 = arith.constant 0 : index
    %c0_59 = arith.constant 0 : index
    %78 = vector.load %arg1[%c11_57, %c0_58, %c0_59] : memref<20x17x1xf32, #tpu.memory_space<vmem>>, vector<1x17x1xf32>
    %79 = vector.shape_cast %78 : vector<1x17x1xf32> to vector<17x1xf32>
    %80 = vector.broadcast %79 : vector<17x1xf32> to vector<17x512xf32>
    %81 = arith.mulf %77, %80 : vector<17x512xf32>
    %82 = arith.addf %75, %81 : vector<17x512xf32>
    %c12 = arith.constant 12 : index
    %c0_60 = arith.constant 0 : index
    %c0_61 = arith.constant 0 : index
    %83 = vector.load %arg2[%c12, %c0_60, %c0_61] : memref<18x17x512xf32, #tpu.memory_space<vmem>>, vector<1x17x512xf32>
    %84 = vector.shape_cast %83 : vector<1x17x512xf32> to vector<17x512xf32>
    %c12_62 = arith.constant 12 : index
    %c0_63 = arith.constant 0 : index
    %c0_64 = arith.constant 0 : index
    %85 = vector.load %arg1[%c12_62, %c0_63, %c0_64] : memref<20x17x1xf32, #tpu.memory_space<vmem>>, vector<1x17x1xf32>
    %86 = vector.shape_cast %85 : vector<1x17x1xf32> to vector<17x1xf32>
    %87 = vector.broadcast %86 : vector<17x1xf32> to vector<17x512xf32>
    %88 = arith.mulf %84, %87 : vector<17x512xf32>
    %89 = arith.addf %82, %88 : vector<17x512xf32>
    %c13 = arith.constant 13 : index
    %c0_65 = arith.constant 0 : index
    %c0_66 = arith.constant 0 : index
    %90 = vector.load %arg2[%c13, %c0_65, %c0_66] : memref<18x17x512xf32, #tpu.memory_space<vmem>>, vector<1x17x512xf32>
    %91 = vector.shape_cast %90 : vector<1x17x512xf32> to vector<17x512xf32>
    %c13_67 = arith.constant 13 : index
    %c0_68 = arith.constant 0 : index
    %c0_69 = arith.constant 0 : index
    %92 = vector.load %arg1[%c13_67, %c0_68, %c0_69] : memref<20x17x1xf32, #tpu.memory_space<vmem>>, vector<1x17x1xf32>
    %93 = vector.shape_cast %92 : vector<1x17x1xf32> to vector<17x1xf32>
    %94 = vector.broadcast %93 : vector<17x1xf32> to vector<17x512xf32>
    %95 = arith.mulf %91, %94 : vector<17x512xf32>
    %96 = arith.addf %89, %95 : vector<17x512xf32>
    %c14 = arith.constant 14 : index
    %c0_70 = arith.constant 0 : index
    %c0_71 = arith.constant 0 : index
    %97 = vector.load %arg2[%c14, %c0_70, %c0_71] : memref<18x17x512xf32, #tpu.memory_space<vmem>>, vector<1x17x512xf32>
    %98 = vector.shape_cast %97 : vector<1x17x512xf32> to vector<17x512xf32>
    %c14_72 = arith.constant 14 : index
    %c0_73 = arith.constant 0 : index
    %c0_74 = arith.constant 0 : index
    %99 = vector.load %arg1[%c14_72, %c0_73, %c0_74] : memref<20x17x1xf32, #tpu.memory_space<vmem>>, vector<1x17x1xf32>
    %100 = vector.shape_cast %99 : vector<1x17x1xf32> to vector<17x1xf32>
    %101 = vector.broadcast %100 : vector<17x1xf32> to vector<17x512xf32>
    %102 = arith.mulf %98, %101 : vector<17x512xf32>
    %103 = arith.addf %96, %102 : vector<17x512xf32>
    %c15 = arith.constant 15 : index
    %c0_75 = arith.constant 0 : index
    %c0_76 = arith.constant 0 : index
    %104 = vector.load %arg2[%c15, %c0_75, %c0_76] : memref<18x17x512xf32, #tpu.memory_space<vmem>>, vector<1x17x512xf32>
    %105 = vector.shape_cast %104 : vector<1x17x512xf32> to vector<17x512xf32>
    %c15_77 = arith.constant 15 : index
    %c0_78 = arith.constant 0 : index
    %c0_79 = arith.constant 0 : index
    %106 = vector.load %arg1[%c15_77, %c0_78, %c0_79] : memref<20x17x1xf32, #tpu.memory_space<vmem>>, vector<1x17x1xf32>
    %107 = vector.shape_cast %106 : vector<1x17x1xf32> to vector<17x1xf32>
    %108 = vector.broadcast %107 : vector<17x1xf32> to vector<17x512xf32>
    %109 = arith.mulf %105, %108 : vector<17x512xf32>
    %110 = arith.addf %103, %109 : vector<17x512xf32>
    %c16 = arith.constant 16 : index
    %c0_80 = arith.constant 0 : index
    %c0_81 = arith.constant 0 : index
    %111 = vector.load %arg2[%c16, %c0_80, %c0_81] : memref<18x17x512xf32, #tpu.memory_space<vmem>>, vector<1x17x512xf32>
    %112 = vector.shape_cast %111 : vector<1x17x512xf32> to vector<17x512xf32>
    %c16_82 = arith.constant 16 : index
    %c0_83 = arith.constant 0 : index
    %c0_84 = arith.constant 0 : index
    %113 = vector.load %arg1[%c16_82, %c0_83, %c0_84] : memref<20x17x1xf32, #tpu.memory_space<vmem>>, vector<1x17x1xf32>
    %114 = vector.shape_cast %113 : vector<1x17x1xf32> to vector<17x1xf32>
    %115 = vector.broadcast %114 : vector<17x1xf32> to vector<17x512xf32>
    %116 = arith.mulf %112, %115 : vector<17x512xf32>
    %117 = arith.addf %110, %116 : vector<17x512xf32>
    %c17 = arith.constant 17 : index
    %c0_85 = arith.constant 0 : index
    %c0_86 = arith.constant 0 : index
    %118 = vector.load %arg2[%c17, %c0_85, %c0_86] : memref<18x17x512xf32, #tpu.memory_space<vmem>>, vector<1x17x512xf32>
    %119 = vector.shape_cast %118 : vector<1x17x512xf32> to vector<17x512xf32>
    %c17_87 = arith.constant 17 : index
    %c0_88 = arith.constant 0 : index
    %c0_89 = arith.constant 0 : index
    %120 = vector.load %arg1[%c17_87, %c0_88, %c0_89] : memref<20x17x1xf32, #tpu.memory_space<vmem>>, vector<1x17x1xf32>
    %121 = vector.shape_cast %120 : vector<1x17x1xf32> to vector<17x1xf32>
    %122 = vector.broadcast %121 : vector<17x1xf32> to vector<17x512xf32>
    %123 = arith.mulf %119, %122 : vector<17x512xf32>
    %124 = arith.addf %117, %123 : vector<17x512xf32>
    %cst = arith.constant dense<0.000000e+00> : vector<17xf32>
    %125 = vector.multi_reduction <add>, %124, %cst [1] : vector<17x512xf32> to vector<17xf32>
    %126 = vector.shape_cast %125 : vector<17xf32> to vector<17x1xf32>
    %cst_90 = arith.constant 0.001953125 : f32
    %127 = vector.broadcast %cst_90 : f32 to vector<17x1xf32>
    %128 = arith.mulf %126, %127 : vector<17x1xf32>
    %129 = vector.broadcast %128 : vector<17x1xf32> to vector<17x512xf32>
    %130 = arith.subf %124, %129 : vector<17x512xf32>
    %131 = arith.mulf %130, %130 : vector<17x512xf32>
    %cst_91 = arith.constant dense<0.000000e+00> : vector<17xf32>
    %132 = vector.multi_reduction <add>, %131, %cst_91 [1] : vector<17x512xf32> to vector<17xf32>
    %133 = vector.shape_cast %132 : vector<17xf32> to vector<17x1xf32>
    %cst_92 = arith.constant 0.001953125 : f32
    %134 = vector.broadcast %cst_92 : f32 to vector<17x1xf32>
    %135 = arith.mulf %133, %134 : vector<17x1xf32>
    %cst_93 = arith.constant 9.99999974E-6 : f32
    %136 = vector.broadcast %cst_93 : f32 to vector<17x1xf32>
    %137 = arith.addf %135, %136 : vector<17x1xf32>
    %138 = math.rsqrt %137 : vector<17x1xf32>
    %c18 = arith.constant 18 : index
    %c0_94 = arith.constant 0 : index
    %c0_95 = arith.constant 0 : index
    %139 = vector.load %arg1[%c18, %c0_94, %c0_95] : memref<20x17x1xf32, #tpu.memory_space<vmem>>, vector<1x17x1xf32>
    %140 = vector.shape_cast %139 : vector<1x17x1xf32> to vector<17x1xf32>
    %141 = arith.mulf %138, %140 : vector<17x1xf32>
    %142 = vector.broadcast %141 : vector<17x1xf32> to vector<17x512xf32>
    %143 = arith.mulf %130, %142 : vector<17x512xf32>
    %c19 = arith.constant 19 : index
    %c0_96 = arith.constant 0 : index
    %c0_97 = arith.constant 0 : index
    %144 = vector.load %arg1[%c19, %c0_96, %c0_97] : memref<20x17x1xf32, #tpu.memory_space<vmem>>, vector<1x17x1xf32>
    %145 = vector.shape_cast %144 : vector<1x17x1xf32> to vector<17x1xf32>
    %146 = vector.broadcast %145 : vector<17x1xf32> to vector<17x512xf32>
    %147 = arith.addf %143, %146 : vector<17x512xf32>
    %cst_98 = arith.constant 0.000000e+00 : f32
    %148 = vector.broadcast %cst_98 : f32 to vector<17x512xf32>
    %149 = arith.maximumf %147, %148 : vector<17x512xf32>
    %c0_99 = arith.constant 0 : index
    %c0_100 = arith.constant 0 : index
    %150 = vector.load %arg3[%c0_99, %c0_100] : memref<17x512xf32, #tpu.memory_space<vmem>>, vector<17x512xf32>
    tpu.vector_store %arg3[%c0_99, %c0_100], %149 {strides = array<i32>} : memref<17x512xf32, #tpu.memory_space<vmem>>, vector<17x512xf32>,
    return
  }
  func.func @transform_0(%arg0: i32) -> (i32, i32, i32) {
    %c0_i32 = arith.constant 0 : i32
    %c0_i32_0 = arith.constant 0 : i32
    %c0_i32_1 = arith.constant 0 : i32
    %c0_i32_2 = arith.constant 0 : i32
    return %c0_i32, %c0_i32_0, %c0_i32_1 : i32, i32, i32
  }
  func.func @transform_1(%arg0: i32) -> (i32, i32, i32) {
    %c0_i32 = arith.constant 0 : i32
    %c0_i32_0 = arith.constant 0 : i32
    %c0_i32_1 = arith.constant 0 : i32
    %c0_i32_2 = arith.constant 0 : i32
    return %c0_i32, %c0_i32_0, %c0_i32_1 : i32, i32, i32
  }
  func.func @transform_2(%arg0: i32) -> (i32, i32) {
    %c0_i32 = arith.constant 0 : i32
    %c0_i32_0 = arith.constant 0 : i32
    %c0_i32_1 = arith.constant 0 : i32
    return %c0_i32, %c0_i32_0 : i32, i32
  }
}

</mosaic_0001>

<llo_original>
// kernel: squeeze.1
$region0: #{squeeze.1}
  %s0 = inlined_call_operand.vmem [shape: f32[34,1,3,3], index: 0, kind: input, shape index: {}]
  %s1 = inlined_call_operand.vmem [shape: f32[17,2,9], index: 1, kind: output, shape index: {}]
  $region1: #{squeeze.1} parent=0
    #allocation0 [shape = 'u8[69632]{0}', space=vmem, size = 0x11000, scoped, tag = 'scoped mem for output reshape']
    #allocation1 [shape = 'u8[139264]{0}', space=vmem, size = 0x22000, scoped, tag = 'scoped mem for input reshape']
    %s3 = sshllo.u32 0, 4
    %s4 = smul.addr 4, 33
    %s5 = scalar_lea.vmem %s0, %s4
    %v6 = vld [vmem:[%s5] sm:%s3]
    %s7 = scalar_lea.vmem [#allocation1], 264
    %8 = vst [vmem:[%s7] sm:%s3] %v6
    %s9 = smul.addr 4, 32
    %s10 = scalar_lea.vmem %s0, %s9
    %v11 = vld [vmem:[%s10] sm:%s3]
    %s12 = scalar_lea.vmem [#allocation1], 256
    %13 = vst [vmem:[%s12] sm:%s3] %v11
    %s14 = smul.addr 4, 31
    %s15 = scalar_lea.vmem %s0, %s14
    %v16 = vld [vmem:[%s15] sm:%s3]
    %s17 = scalar_lea.vmem [#allocation1], 248
    %18 = vst [vmem:[%s17] sm:%s3] %v16
    %s19 = smul.addr 4, 30
    %s20 = scalar_lea.vmem %s0, %s19
    %v21 = vld [vmem:[%s20] sm:%s3]
    %s22 = scalar_lea.vmem [#allocation1], 240
    %23 = vst [vmem:[%s22] sm:%s3] %v21
    %s24 = smul.addr 4, 29
    %s25 = scalar_lea.vmem %s0, %s24
    %v26 = vld [vmem:[%s25] sm:%s3]
    %s27 = scalar_lea.vmem [#allocation1], 232
    %28 = vst [vmem:[%s27] sm:%s3] %v26
    %s29 = smul.addr 4, 28
    %s30 = scalar_lea.vmem %s0, %s29
    %v31 = vld [vmem:[%s30] sm:%s3]
    %s32 = scalar_lea.vmem [#allocation1], 224
    %33 = vst [vmem:[%s32] sm:%s3] %v31
    %s34 = smul.addr 4, 27
    %s35 = scalar_lea.vmem %s0, %s34
    %v36 = vld [vmem:[%s35] sm:%s3]
    %s37 = scalar_lea.vmem [#allocation1], 216
    %38 = vst [vmem:[%s37] sm:%s3] %v36
    %s39 = smul.addr 4, 26
    %s40 = scalar_lea.vmem %s0, %s39
    %v41 = vld [vmem:[%s40] sm:%s3]
    %s42 = scalar_lea.vmem [#allocation1], 208
    %43 = vst [vmem:[%s42] sm:%s3] %v41
    %s44 = smul.addr 4, 25
    %s45 = scalar_lea.vmem %s0, %s44
    %v46 = vld [vmem:[%s45] sm:%s3]
    %s47 = scalar_lea.vmem [#allocation1], 200
    %48 = vst [vmem:[%s47] sm:%s3] %v46
    %s49 = smul.addr 4, 24
    %s50 = scalar_lea.vmem %s0, %s49
    %v51 = vld [vmem:[%s50] sm:%s3]
    %s52 = scalar_lea.vmem [#allocation1], 192
    %53 = vst [vmem:[%s52] sm:%s3] %v51
    %s54 = smul.addr 4, 23
    %s55 = scalar_lea.vmem %s0, %s54
    %v56 = vld [vmem:[%s55] sm:%s3]
    %s57 = scalar_lea.vmem [#allocation1], 184
    %58 = vst [vmem:[%s57] sm:%s3] %v56
    %s59 = smul.addr 4, 22
    %s60 = scalar_lea.vmem %s0, %s59
    %v61 = vld [vmem:[%s60] sm:%s3]
    %s62 = scalar_lea.vmem [#allocation1], 176
    %63 = vst [vmem:[%s62] sm:%s3] %v61
    %s64 = smul.addr 4, 21
    %s65 = scalar_lea.vmem %s0, %s64
    %v66 = vld [vmem:[%s65] sm:%s3]
    %s67 = scalar_lea.vmem [#allocation1], 168
    %68 = vst [vmem:[%s67] sm:%s3] %v66
    %s69 = smul.addr 4, 20
    %s70 = scalar_lea.vmem %s0, %s69
    %v71 = vld [vmem:[%s70] sm:%s3]
    %s72 = scalar_lea.vmem [#allocation1], 160
    %73 = vst [vmem:[%s72] sm:%s3] %v71
    %s74 = smul.addr 4, 19
    %s75 = scalar_lea.vmem %s0, %s74
    %v76 = vld [vmem:[%s75] sm:%s3]
    %s77 = scalar_lea.vmem [#allocation1], 152
    %78 = vst [vmem:[%s77] sm:%s3] %v76
    %s79 = smul.addr 4, 18
    %s80 = scalar_lea.vmem %s0, %s79
    %v81 = vld [vmem:[%s80] sm:%s3]
    %s82 = scalar_lea.vmem [#allocation1], 144
    %83 = vst [vmem:[%s82] sm:%s3] %v81
    %s84 = smul.addr 4, 17
    %s85 = scalar_lea.vmem %s0, %s84
    %v86 = vld [vmem:[%s85] sm:%s3]
    %s87 = scalar_lea.vmem [#allocation1], 136
    %88 = vst [vmem:[%s87] sm:%s3] %v86
    %s89 = smul.addr 4, 16
    %s90 = scalar_lea.vmem %s0, %s89
    %v91 = vld [vmem:[%s90] sm:%s3]
    %s92 = scalar_lea.vmem [#allocation1], 128
    %93 = vst [vmem:[%s92] sm:%s3] %v91
    %s94 = smul.addr 4, 15
    %s95 = scalar_lea.vmem %s0, %s94
    %v96 = vld [vmem:[%s95] sm:%s3]
    %s97 = scalar_lea.vmem [#allocation1], 120
    %98 = vst [vmem:[%s97] sm:%s3] %v96
    %s99 = smul.addr 4, 14
    %s100 = scalar_lea.vmem %s0, %s99
    %v101 = vld [vmem:[%s100] sm:%s3]
    %s102 = scalar_lea.vmem [#allocation1], 112
    %103 = vst [vmem:[%s102] sm:%s3] %v101
    %s104 = smul.addr 4, 13
    %s105 = scalar_lea.vmem %s0, %s104
    %v106 = vld [vmem:[%s105] sm:%s3]
    %s107 = scalar_lea.vmem [#allocation1], 104
    %108 = vst [vmem:[%s107] sm:%s3] %v106
    %s109 = smul.addr 4, 12
    %s110 = scalar_lea.vmem %s0, %s109
    %v111 = vld [vmem:[%s110] sm:%s3]
    %s112 = scalar_lea.vmem [#allocation1], 96
    %113 = vst [vmem:[%s112] sm:%s3] %v111
    %s114 = smul.addr 4, 11
    %s115 = scalar_lea.vmem %s0, %s114
    %v116 = vld [vmem:[%s115] sm:%s3]
    %s117 = scalar_lea.vmem [#allocation1], 88
    %118 = vst [vmem:[%s117] sm:%s3] %v116
    %s119 = smul.addr 4, 10
    %s120 = scalar_lea.vmem %s0, %s119
    %v121 = vld [vmem:[%s120] sm:%s3]
    %s122 = scalar_lea.vmem [#allocation1], 80
    %123 = vst [vmem:[%s122] sm:%s3] %v121
    %s124 = smul.addr 4, 9
    %s125 = scalar_lea.vmem %s0, %s124
    %v126 = vld [vmem:[%s125] sm:%s3]
    %s127 = scalar_lea.vmem [#allocation1], 72
    %128 = vst [vmem:[%s127] sm:%s3] %v126
    %s129 = smul.addr 4, 8
    %s130 = scalar_lea.vmem %s0, %s129
    %v131 = vld [vmem:[%s130] sm:%s3]
    %s132 = scalar_lea.vmem [#allocation1], 64
    %133 = vst [vmem:[%s132] sm:%s3] %v131
    %s134 = smul.addr 4, 7
    %s135 = scalar_lea.vmem %s0, %s134
    %v136 = vld [vmem:[%s135] sm:%s3]
    %s137 = scalar_lea.vmem [#allocation1], 56
    %138 = vst [vmem:[%s137] sm:%s3] %v136
    %s139 = smul.addr 4, 6
    %s140 = scalar_lea.vmem %s0, %s139
    %v141 = vld [vmem:[%s140] sm:%s3]
    %s142 = scalar_lea.vmem [#allocation1], 48
    %143 = vst [vmem:[%s142] sm:%s3] %v141
    %s144 = smul.addr 4, 5
    %s145 = scalar_lea.vmem %s0, %s144
    %v146 = vld [vmem:[%s145] sm:%s3]
    %s147 = scalar_lea.vmem [#allocation1], 40
    %148 = vst [vmem:[%s147] sm:%s3] %v146
    %s149 = smul.addr 4, 4
    %s150 = scalar_lea.vmem %s0, %s149
    %v151 = vld [vmem:[%s150] sm:%s3]
    %s152 = scalar_lea.vmem [#allocation1], 32
    %153 = vst [vmem:[%s152] sm:%s3] %v151
    %s154 = smul.addr 4, 3
    %s155 = scalar_lea.vmem %s0, %s154
    %v156 = vld [vmem:[%s155] sm:%s3]
    %s157 = scalar_lea.vmem [#allocation1], 24
    %158 = vst [vmem:[%s157] sm:%s3] %v156
    %s159 = smul.addr 4, 2
    %s160 = scalar_lea.vmem %s0, %s159
    %v161 = vld [vmem:[%s160] sm:%s3]
    %s162 = scalar_lea.vmem [#allocation1], 16
    %163 = vst [vmem:[%s162] sm:%s3] %v161
    %s164 = scalar_lea.vmem %s0, 4
    %v165 = vld [vmem:[%s164] sm:%s3]
    %s166 = scalar_lea.vmem [#allocation1], 8
    %167 = vst [vmem:[%s166] sm:%s3] %v165
    %v168 = vld [vmem:[%s0] sm:%s3]
    %169 = vst [vmem:[#allocation1] sm:%s3] %v168
    %v170 = vld [vmem:[#allocation1] ss:$8 sm:$0xf]
    %v171 = vld [vmem:[#allocation1] ss:$8 sm:$0xf0]
    %vm172 = vcmask 1047556
    %v173 = vsel %vm172, %v171, %v170
    %vm174 = vcmask 23552
    %175 = vst.msk [vmem:[#allocation0] sm:$0x3] %vm174, %v173
    %s176 = scalar_lea.vmem [#allocation0], 6
    %177 = vst.msk [vmem:[%s176] sm:$0xc] %vm174, %v173
    %s178 = scalar_lea.vmem [#allocation0], 12
    %179 = vst.msk [vmem:[%s178] sm:$0x30] %vm174, %v173
    %s180 = scalar_lea.vmem [#allocation0], 18
    %181 = vst.msk [vmem:[%s180] sm:$0xc0] %vm174, %v173
    %s182 = scalar_lea.vmem [#allocation1], 64
    %v183 = vld [vmem:[%s182] ss:$8 sm:$0xf]
    %s184 = scalar_lea.vmem [#allocation1], 64
    %v185 = vld [vmem:[%s184] ss:$8 sm:$0xf0]
    %vm186 = vcmask 1047556
    %v187 = vsel %vm186, %v185, %v183
    %vm188 = vcmask 23552
    %s189 = scalar_lea.vmem [#allocation0], 32
    %190 = vst.msk [vmem:[%s189] sm:$0x3] %vm188, %v187
    %s191 = scalar_lea.vmem [#allocation0], 38
    %192 = vst.msk [vmem:[%s191] sm:$0xc] %vm188, %v187
    %s193 = scalar_lea.vmem [#allocation0], 44
    %194 = vst.msk [vmem:[%s193] sm:$0x30] %vm188, %v187
    %s195 = scalar_lea.vmem [#allocation0], 50
    %196 = vst.msk [vmem:[%s195] sm:$0xc0] %vm188, %v187
    %s197 = scalar_lea.vmem [#allocation1], 128
    %v198 = vld [vmem:[%s197] ss:$8 sm:$0xf]
    %s199 = scalar_lea.vmem [#allocation1], 128
    %v200 = vld [vmem:[%s199] ss:$8 sm:$0xf0]
    %vm201 = vcmask 1047556
    %v202 = vsel %vm201, %v200, %v198
    %vm203 = vcmask 23552
    %s204 = scalar_lea.vmem [#allocation0], 64
    %205 = vst.msk [vmem:[%s204] sm:$0x3] %vm203, %v202
    %s206 = scalar_lea.vmem [#allocation0], 70
    %207 = vst.msk [vmem:[%s206] sm:$0xc] %vm203, %v202
    %s208 = scalar_lea.vmem [#allocation0], 76
    %209 = vst.msk [vmem:[%s208] sm:$0x30] %vm203, %v202
    %s210 = scalar_lea.vmem [#allocation0], 82
    %211 = vst.msk [vmem:[%s210] sm:$0xc0] %vm203, %v202
    %s212 = scalar_lea.vmem [#allocation1], 192
    %v213 = vld [vmem:[%s212] ss:$8 sm:$0xf]
    %s214 = scalar_lea.vmem [#allocation1], 192
    %v215 = vld [vmem:[%s214] ss:$8 sm:$0xf0]
    %vm216 = vcmask 1047556
    %v217 = vsel %vm216, %v215, %v213
    %vm218 = vcmask 23552
    %s219 = scalar_lea.vmem [#allocation0], 96
    %220 = vst.msk [vmem:[%s219] sm:$0x3] %vm218, %v217
    %s221 = scalar_lea.vmem [#allocation0], 102
    %222 = vst.msk [vmem:[%s221] sm:$0xc] %vm218, %v217
    %s223 = scalar_lea.vmem [#allocation0], 108
    %224 = vst.msk [vmem:[%s223] sm:$0x30] %vm218, %v217
    %s225 = scalar_lea.vmem [#allocation0], 114
    %226 = vst.msk [vmem:[%s225] sm:$0xc0] %vm218, %v217
    %s227 = scalar_lea.vmem [#allocation1], 256
    %s228 = smov 3
    %v229 = vld [vmem:[%s227] ss:$8 sm:%s228]
    %vm230 = vcmask 23552
    %s231 = scalar_lea.vmem [#allocation0], 128
    %232 = vst.msk [vmem:[%s231] sm:$0x3] %vm230, %v229
    %s233 = scalar_lea.vmem [#allocation1], 2
    %v234 = vld [vmem:[%s233] ss:$8 sm:$0xf]
    %s235 = scalar_lea.vmem [#allocation1], 2
    %v236 = vld [vmem:[%s235] ss:$8 sm:$0xf0]
    %vm237 = vcmask 1047556
    %v238 = vsel %vm237, %v236, %v234
    %239 = vrot.lane.b32.xlu0 %v238, 6
    %v240 = vpop.permute.xlu0 %239
    %vm241 = vcmask 72752
    %242 = vst.msk [vmem:[#allocation0] sm:$0x3] %vm241, %v240
    %s243 = scalar_lea.vmem [#allocation0], 6
    %244 = vst.msk [vmem:[%s243] sm:$0xc] %vm241, %v240
    %s245 = scalar_lea.vmem [#allocation0], 12
    %246 = vst.msk [vmem:[%s245] sm:$0x30] %vm241, %v240
    %s247 = scalar_lea.vmem [#allocation0], 18
    %248 = vst.msk [vmem:[%s247] sm:$0xc0] %vm241, %v240
    %s249 = scalar_lea.vmem [#allocation1], 66
    %v250 = vld [vmem:[%s249] ss:$8 sm:$0xf]
    %s251 = scalar_lea.vmem [#allocation1], 66
    %v252 = vld [vmem:[%s251] ss:$8 sm:$0xf0]
    %vm253 = vcmask 1047556
    %v254 = vsel %vm253, %v252, %v250
    %255 = vrot.lane.b32.xlu0 %v254, 6
    %v256 = vpop.permute.xlu0 %255
    %vm257 = vcmask 72752
    %s258 = scalar_lea.vmem [#allocation0], 32
    %259 = vst.msk [vmem:[%s258] sm:$0x3] %vm257, %v256
    %s260 = scalar_lea.vmem [#allocation0], 38
    %261 = vst.msk [vmem:[%s260] sm:$0xc] %vm257, %v256
    %s262 = scalar_lea.vmem [#allocation0], 44
    %263 = vst.msk [vmem:[%s262] sm:$0x30] %vm257, %v256
    %s264 = scalar_lea.vmem [#allocation0], 50
    %265 = vst.msk [vmem:[%s264] sm:$0xc0] %vm257, %v256
    %s266 = scalar_lea.vmem [#allocation1], 130
    %v267 = vld [vmem:[%s266] ss:$8 sm:$0xf]
    %s268 = scalar_lea.vmem [#allocation1], 130
    %v269 = vld [vmem:[%s268] ss:$8 sm:$0xf0]
    %vm270 = vcmask 1047556
    %v271 = vsel %vm270, %v269, %v267
    %272 = vrot.lane.b32.xlu0 %v271, 6
    %v273 = vpop.permute.xlu0 %272
    %vm274 = vcmask 72752
    %s275 = scalar_lea.vmem [#allocation0], 64
    %276 = vst.msk [vmem:[%s275] sm:$0x3] %vm274, %v273
    %s277 = scalar_lea.vmem [#allocation0], 70
    %278 = vst.msk [vmem:[%s277] sm:$0xc] %vm274, %v273
    %s279 = scalar_lea.vmem [#allocation0], 76
    %280 = vst.msk [vmem:[%s279] sm:$0x30] %vm274, %v273
    %s281 = scalar_lea.vmem [#allocation0], 82
    %282 = vst.msk [vmem:[%s281] sm:$0xc0] %vm274, %v273
    %s283 = scalar_lea.vmem [#allocation1], 194
    %v284 = vld [vmem:[%s283] ss:$8 sm:$0xf]
    %s285 = scalar_lea.vmem [#allocation1], 194
    %v286 = vld [vmem:[%s285] ss:$8 sm:$0xf0]
    %vm287 = vcmask 1047556
    %v288 = vsel %vm287, %v286, %v284
    %289 = vrot.lane.b32.xlu0 %v288, 6
    %v290 = vpop.permute.xlu0 %289
    %vm291 = vcmask 72752
    %s292 = scalar_lea.vmem [#allocation0], 96
    %293 = vst.msk [vmem:[%s292] sm:$0x3] %vm291, %v290
    %s294 = scalar_lea.vmem [#allocation0], 102
    %295 = vst.msk [vmem:[%s294] sm:$0xc] %vm291, %v290
    %s296 = scalar_lea.vmem [#allocation0], 108
    %297 = vst.msk [vmem:[%s296] sm:$0x30] %vm291, %v290
    %s298 = scalar_lea.vmem [#allocation0], 114
    %299 = vst.msk [vmem:[%s298] sm:$0xc0] %vm291, %v290
    %s300 = scalar_lea.vmem [#allocation1], 258
    %s301 = smov 3
    %v302 = vld [vmem:[%s300] ss:$8 sm:%s301]
    %303 = vrot.lane.b32.xlu0 %v302, 6
    %v304 = vpop.permute.xlu0 %303
    %vm305 = vcmask 72752
    %s306 = scalar_lea.vmem [#allocation0], 128
    %307 = vst.msk [vmem:[%s306] sm:$0x3] %vm305, %v304
    %s308 = scalar_lea.vmem [#allocation1], 1
    %v309 = vld [vmem:[%s308] ss:$8 sm:$0xf]
    %s310 = scalar_lea.vmem [#allocation1], 1
    %v311 = vld [vmem:[%s310] ss:$8 sm:$0xf0]
    %vm312 = vcmask 1047556
    %v313 = vsel %vm312, %v311, %v309
    %314 = vrot.lane.b32.xlu0 %v313, 3
    %v315 = vpop.permute.xlu0 %314
    %vm316 = vcmask 48152
    %317 = vst.msk [vmem:[#allocation0] sm:$0x3] %vm316, %v315
    %s318 = scalar_lea.vmem [#allocation0], 6
    %319 = vst.msk [vmem:[%s318] sm:$0xc] %vm316, %v315
    %s320 = scalar_lea.vmem [#allocation0], 12
    %321 = vst.msk [vmem:[%s320] sm:$0x30] %vm316, %v315
    %s322 = scalar_lea.vmem [#allocation0], 18
    %323 = vst.msk [vmem:[%s322] sm:$0xc0] %vm316, %v315
    %s324 = scalar_lea.vmem [#allocation1], 65
    %v325 = vld [vmem:[%s324] ss:$8 sm:$0xf]
    %s326 = scalar_lea.vmem [#allocation1], 65
    %v327 = vld [vmem:[%s326] ss:$8 sm:$0xf0]
    %vm328 = vcmask 1047556
    %v329 = vsel %vm328, %v327, %v325
    %330 = vrot.lane.b32.xlu0 %v329, 3
    %v331 = vpop.permute.xlu0 %330
    %vm332 = vcmask 48152
    %s333 = scalar_lea.vmem [#allocation0], 32
    %334 = vst.msk [vmem:[%s333] sm:$0x3] %vm332, %v331
    %s335 = scalar_lea.vmem [#allocation0], 38
    %336 = vst.msk [vmem:[%s335] sm:$0xc] %vm332, %v331
    %s337 = scalar_lea.vmem [#allocation0], 44
    %338 = vst.msk [vmem:[%s337] sm:$0x30] %vm332, %v331
    %s339 = scalar_lea.vmem [#allocation0], 50
    %340 = vst.msk [vmem:[%s339] sm:$0xc0] %vm332, %v331
    %s341 = scalar_lea.vmem [#allocation1], 129
    %v342 = vld [vmem:[%s341] ss:$8 sm:$0xf]
    %s343 = scalar_lea.vmem [#allocation1], 129
    %v344 = vld [vmem:[%s343] ss:$8 sm:$0xf0]
    %vm345 = vcmask 1047556
    %v346 = vsel %vm345, %v344, %v342
    %347 = vrot.lane.b32.xlu0 %v346, 3
    %v348 = vpop.permute.xlu0 %347
    %vm349 = vcmask 48152
    %s350 = scalar_lea.vmem [#allocation0], 64
    %351 = vst.msk [vmem:[%s350] sm:$0x3] %vm349, %v348
    %s352 = scalar_lea.vmem [#allocation0], 70
    %353 = vst.msk [vmem:[%s352] sm:$0xc] %vm349, %v348
    %s354 = scalar_lea.vmem [#allocation0], 76
    %355 = vst.msk [vmem:[%s354] sm:$0x30] %vm349, %v348
    %s356 = scalar_lea.vmem [#allocation0], 82
    %357 = vst.msk [vmem:[%s356] sm:$0xc0] %vm349, %v348
    %s358 = scalar_lea.vmem [#allocation1], 193
    %v359 = vld [vmem:[%s358] ss:$8 sm:$0xf]
    %s360 = scalar_lea.vmem [#allocation1], 193
    %v361 = vld [vmem:[%s360] ss:$8 sm:$0xf0]
    %vm362 = vcmask 1047556
    %v363 = vsel %vm362, %v361, %v359
    %364 = vrot.lane.b32.xlu0 %v363, 3
    %v365 = vpop.permute.xlu0 %364
    %vm366 = vcmask 48152
    %s367 = scalar_lea.vmem [#allocation0], 96
    %368 = vst.msk [vmem:[%s367] sm:$0x3] %vm366, %v365
    %s369 = scalar_lea.vmem [#allocation0], 102
    %370 = vst.msk [vmem:[%s369] sm:$0xc] %vm366, %v365
    %s371 = scalar_lea.vmem [#allocation0], 108
    %372 = vst.msk [vmem:[%s371] sm:$0x30] %vm366, %v365
    %s373 = scalar_lea.vmem [#allocation0], 114
    %374 = vst.msk [vmem:[%s373] sm:$0xc0] %vm366, %v365
    %s375 = scalar_lea.vmem [#allocation1], 257
    %s376 = smov 3
    %v377 = vld [vmem:[%s375] ss:$8 sm:%s376]
    %378 = vrot.lane.b32.xlu0 %v377, 3
    %v379 = vpop.permute.xlu0 %378
    %vm380 = vcmask 48152
    %s381 = scalar_lea.vmem [#allocation0], 128
    %382 = vst.msk [vmem:[%s381] sm:$0x3] %vm380, %v379
    %s384 = sshllo.u32 0, 2
    %v386 = vld [vmem:[#allocation0] sm:%s384]
    %s387 = sshllo.u32 0, 2
    %388 = vst [vmem:[%s1] sm:%s387] %v386
    %s389 = scalar_lea.vmem [#allocation0], 8
    %v390 = vld [vmem:[%s389] sm:%s384]
    %s391 = sshllo.u32 0, 2
    %s392 = scalar_lea.vmem %s1, 2
    %393 = vst [vmem:[%s392] sm:%s391] %v390
    %s394 = scalar_lea.vmem [#allocation0], 16
    %v395 = vld [vmem:[%s394] sm:%s384]
    %s396 = sshllo.u32 0, 2
    %s397 = smul.addr 2, 2
    %s398 = scalar_lea.vmem %s1, %s397
    %399 = vst [vmem:[%s398] sm:%s396] %v395
    %s400 = scalar_lea.vmem [#allocation0], 24
    %v401 = vld [vmem:[%s400] sm:%s384]
    %s402 = sshllo.u32 0, 2
    %s403 = smul.addr 2, 3
    %s404 = scalar_lea.vmem %s1, %s403
    %405 = vst [vmem:[%s404] sm:%s402] %v401
    %s406 = scalar_lea.vmem [#allocation0], 32
    %v407 = vld [vmem:[%s406] sm:%s384]
    %s408 = sshllo.u32 0, 2
    %s409 = smul.addr 2, 4
    %s410 = scalar_lea.vmem %s1, %s409
    %411 = vst [vmem:[%s410] sm:%s408] %v407
    %s412 = scalar_lea.vmem [#allocation0], 40
    %v413 = vld [vmem:[%s412] sm:%s384]
    %s414 = sshllo.u32 0, 2
    %s415 = smul.addr 2, 5
    %s416 = scalar_lea.vmem %s1, %s415
    %417 = vst [vmem:[%s416] sm:%s414] %v413
    %s418 = scalar_lea.vmem [#allocation0], 48
    %v419 = vld [vmem:[%s418] sm:%s384]
    %s420 = sshllo.u32 0, 2
    %s421 = smul.addr 2, 6
    %s422 = scalar_lea.vmem %s1, %s421
    %423 = vst [vmem:[%s422] sm:%s420] %v419
    %s424 = scalar_lea.vmem [#allocation0], 56
    %v425 = vld [vmem:[%s424] sm:%s384]
    %s426 = sshllo.u32 0, 2
    %s427 = smul.addr 2, 7
    %s428 = scalar_lea.vmem %s1, %s427
    %429 = vst [vmem:[%s428] sm:%s426] %v425
    %s430 = scalar_lea.vmem [#allocation0], 64
    %v431 = vld [vmem:[%s430] sm:%s384]
    %s432 = sshllo.u32 0, 2
    %s433 = smul.addr 2, 8
    %s434 = scalar_lea.vmem %s1, %s433
    %435 = vst [vmem:[%s434] sm:%s432] %v431
    %s436 = scalar_lea.vmem [#allocation0], 72
    %v437 = vld [vmem:[%s436] sm:%s384]
    %s438 = sshllo.u32 0, 2
    %s439 = smul.addr 2, 9
    %s440 = scalar_lea.vmem %s1, %s439
    %441 = vst [vmem:[%s440] sm:%s438] %v437
    %s442 = scalar_lea.vmem [#allocation0], 80
    %v443 = vld [vmem:[%s442] sm:%s384]
    %s444 = sshllo.u32 0, 2
    %s445 = smul.addr 2, 10
    %s446 = scalar_lea.vmem %s1, %s445
    %447 = vst [vmem:[%s446] sm:%s444] %v443
    %s448 = scalar_lea.vmem [#allocation0], 88
    %v449 = vld [vmem:[%s448] sm:%s384]
    %s450 = sshllo.u32 0, 2
    %s451 = smul.addr 2, 11
    %s452 = scalar_lea.vmem %s1, %s451
    %453 = vst [vmem:[%s452] sm:%s450] %v449
    %s454 = scalar_lea.vmem [#allocation0], 96
    %v455 = vld [vmem:[%s454] sm:%s384]
    %s456 = sshllo.u32 0, 2
    %s457 = smul.addr 2, 12
    %s458 = scalar_lea.vmem %s1, %s457
    %459 = vst [vmem:[%s458] sm:%s456] %v455
    %s460 = scalar_lea.vmem [#allocation0], 104
    %v461 = vld [vmem:[%s460] sm:%s384]
    %s462 = sshllo.u32 0, 2
    %s463 = smul.addr 2, 13
    %s464 = scalar_lea.vmem %s1, %s463
    %465 = vst [vmem:[%s464] sm:%s462] %v461
    %s466 = scalar_lea.vmem [#allocation0], 112
    %v467 = vld [vmem:[%s466] sm:%s384]
    %s468 = sshllo.u32 0, 2
    %s469 = smul.addr 2, 14
    %s470 = scalar_lea.vmem %s1, %s469
    %471 = vst [vmem:[%s470] sm:%s468] %v467
    %s472 = scalar_lea.vmem [#allocation0], 120
    %v473 = vld [vmem:[%s472] sm:%s384]
    %s474 = sshllo.u32 0, 2
    %s475 = smul.addr 2, 15
    %s476 = scalar_lea.vmem %s1, %s475
    %477 = vst [vmem:[%s476] sm:%s474] %v473
    %s478 = scalar_lea.vmem [#allocation0], 128
    %v479 = vld [vmem:[%s478] sm:%s384]
    %s480 = sshllo.u32 0, 2
    %s481 = smul.addr 2, 16
    %s482 = scalar_lea.vmem %s1, %s481
    %483 = vst [vmem:[%s482] sm:%s480] %v479

// kernel: deconv_block.1
$region0: #{deconv_block.1}
  #allocation0 [shape = 'u32[]', space=smem, size = 0x4, offset = 0x4, fixed_abs, tag = 'smem constant byte address 0x4 - core index']
  #allocation1 [shape = 'u32[144,128]{1,0:T(1,128)}', space=vmem, size = 0x12000, scoped, tag = 'internal scratch']
  %s0 = inlined_call_operand.vmem [shape: f32[20,17,1], index: 0, kind: input, shape index: {}]
  %s1 = inlined_call_operand.vmem [shape: f32[18,17,512], index: 1, kind: input, shape index: {}]
  %s2 = inlined_call_operand.vmem [shape: f32[17,512], index: 2, kind: output, shape index: {}]
  %s3 = sld [smem:[#allocation0]]
  $region18: #{deconv_block.1} parent=0
    _
  %s5 = ssub.s32 1, %s3
  %s6 = scalar_select 0, %s5, %s3
  // Predicated region
  $region2: #{deconv_block.1} parent=0 // pred_check
    _
  $region3: #{deconv_block.1} parent=0 // pred_check_branch
    %8 = sbr.rel (0) target = $region5
  $region4: #{deconv_block.1} parent=0 // pred_region
    _
  $region5: #{deconv_block.1} parent=0 // pred_fallthru
    _
  // Predicated region
  $region6: #{deconv_block.1} parent=0 // pred_check
    _
  $region7: #{deconv_block.1} parent=0 // pred_check_branch
    %10 = sbr.rel (0) target = $region9
  $region8: #{deconv_block.1} parent=0 // pred_region
    _
  $region9: #{deconv_block.1} parent=0 // pred_fallthru
    _
  %v11 = vld [vmem:[%s1] sm:$0xff]
  %v12 = vld [vmem:[%s1 + $0x8] sm:$0xff]
  %v13 = vld [vmem:[%s1 + $0x10] sm:$0xff]
  %v14 = vld [vmem:[%s1 + $0x18] sm:$0xff]
  %v15 = vld [vmem:[%s1 + $0x20] sm:$0xff]
  %v16 = vld [vmem:[%s1 + $0x28] sm:$0xff]
  %v17 = vld [vmem:[%s1 + $0x30] sm:$0xff]
  %v18 = vld [vmem:[%s1 + $0x38] sm:$0xff]
  %v19 = vld [vmem:[%s1 + $0x40] sm:$0x1]
  %v20 = vld [vmem:[%s1 + $0x48] sm:$0x1]
  %v21 = vld [vmem:[%s1 + $0x50] sm:$0x1]
  %v22 = vld [vmem:[%s1 + $0x58] sm:$0x1]
  %v23 = vld [vmem:[%s0] sm:$0xff]
  %v24 = vld [vmem:[%s0 + $0x8] sm:$0xff]
  %v25 = vld [vmem:[%s0 + $0x10] sm:$0x1]
  %27 = vset.pattern.permute.xlu0 0
  %28 = vperm.xlu0 %27, %v23
  %v29 = vpop.permute.xlu0 %28
  %32 = vset.pattern.permute.xlu0 0
  %33 = vperm.xlu0 %32, %v24
  %v34 = vpop.permute.xlu0 %33
  %37 = vset.pattern.permute.xlu0 0
  %38 = vperm.xlu0 %37, %v25
  %v39 = vpop.permute.xlu0 %38
  %v41 = vmul.f32 %v11, %v29
  %v42 = vmul.f32 %v12, %v29
  %v43 = vmul.f32 %v13, %v29
  %v44 = vmul.f32 %v14, %v29
  %v45 = vmul.f32 %v15, %v34
  %v46 = vmul.f32 %v16, %v34
  %v47 = vmul.f32 %v17, %v34
  %v48 = vmul.f32 %v18, %v34
  %v49 = vmul.f32 %v19, %v39
  %v50 = vmul.f32 %v20, %v39
  %v51 = vmul.f32 %v21, %v39
  %v52 = vmul.f32 %v22, %v39
  %s53 = scalar_lea.vmem %s1, 96
  %v54 = vld [vmem:[%s53] sm:$0xff]
  %v55 = vld [vmem:[%s53 + $0x8] sm:$0xff]
  %v56 = vld [vmem:[%s53 + $0x10] sm:$0xff]
  %v57 = vld [vmem:[%s53 + $0x18] sm:$0xff]
  %v58 = vld [vmem:[%s53 + $0x20] sm:$0xff]
  %v59 = vld [vmem:[%s53 + $0x28] sm:$0xff]
  %v60 = vld [vmem:[%s53 + $0x30] sm:$0xff]
  %v61 = vld [vmem:[%s53 + $0x38] sm:$0xff]
  %v62 = vld [vmem:[%s53 + $0x40] sm:$0x1]
  %v63 = vld [vmem:[%s53 + $0x48] sm:$0x1]
  %v64 = vld [vmem:[%s53 + $0x50] sm:$0x1]
  %v65 = vld [vmem:[%s53 + $0x58] sm:$0x1]
  %s66 = scalar_lea.vmem %s0, 24
  %v67 = vld [vmem:[%s66] sm:$0xff]
  %v68 = vld [vmem:[%s66 + $0x8] sm:$0xff]
  %v69 = vld [vmem:[%s66 + $0x10] sm:$0x1]
  %71 = vset.pattern.permute.xlu0 0
  %72 = vperm.xlu0 %71, %v67
  %v73 = vpop.permute.xlu0 %72
  %76 = vset.pattern.permute.xlu0 0
  %77 = vperm.xlu0 %76, %v68
  %v78 = vpop.permute.xlu0 %77
  %81 = vset.pattern.permute.xlu0 0
  %82 = vperm.xlu0 %81, %v69
  %v83 = vpop.permute.xlu0 %82
  %v85 = vmul.f32 %v54, %v73
  %v86 = vmul.f32 %v55, %v73
  %v87 = vmul.f32 %v56, %v73
  %v88 = vmul.f32 %v57, %v73
  %v89 = vmul.f32 %v58, %v78
  %v90 = vmul.f32 %v59, %v78
  %v91 = vmul.f32 %v60, %v78
  %v92 = vmul.f32 %v61, %v78
  %v93 = vmul.f32 %v62, %v83
  %v94 = vmul.f32 %v63, %v83
  %v95 = vmul.f32 %v64, %v83
  %v96 = vmul.f32 %v65, %v83
  %v97 = vadd.f32 %v41, %v85
  %v98 = vadd.f32 %v42, %v86
  %v99 = vadd.f32 %v43, %v87
  %v100 = vadd.f32 %v44, %v88
  %v101 = vadd.f32 %v45, %v89
  %v102 = vadd.f32 %v46, %v90
  %v103 = vadd.f32 %v47, %v91
  %v104 = vadd.f32 %v48, %v92
  %v105 = vadd.f32 %v49, %v93
  %v106 = vadd.f32 %v50, %v94
  %v107 = vadd.f32 %v51, %v95
  %v108 = vadd.f32 %v52, %v96
  %s109 = scalar_lea.vmem %s1, 192
  %v110 = vld [vmem:[%s109] sm:$0xff]
  %v111 = vld [vmem:[%s109 + $0x8] sm:$0xff]
  %v112 = vld [vmem:[%s109 + $0x10] sm:$0xff]
  %v113 = vld [vmem:[%s109 + $0x18] sm:$0xff]
  %v114 = vld [vmem:[%s109 + $0x20] sm:$0xff]
  %v115 = vld [vmem:[%s109 + $0x28] sm:$0xff]
  %v116 = vld [vmem:[%s109 + $0x30] sm:$0xff]
  %v117 = vld [vmem:[%s109 + $0x38] sm:$0xff]
  %v118 = vld [vmem:[%s109 + $0x40] sm:$0x1]
  %v119 = vld [vmem:[%s109 + $0x48] sm:$0x1]
  %v120 = vld [vmem:[%s109 + $0x50] sm:$0x1]
  %v121 = vld [vmem:[%s109 + $0x58] sm:$0x1]
  %s122 = scalar_lea.vmem %s0, 48
  %v123 = vld [vmem:[%s122] sm:$0xff]
  %v124 = vld [vmem:[%s122 + $0x8] sm:$0xff]
  %v125 = vld [vmem:[%s122 + $0x10] sm:$0x1]
  %127 = vset.pattern.permute.xlu0 0
  %128 = vperm.xlu0 %127, %v123
  %v129 = vpop.permute.xlu0 %128
  %132 = vset.pattern.permute.xlu0 0
  %133 = vperm.xlu0 %132, %v124
  %v134 = vpop.permute.xlu0 %133
  %137 = vset.pattern.permute.xlu0 0
  %138 = vperm.xlu0 %137, %v125
  %v139 = vpop.permute.xlu0 %138
  %v141 = vmul.f32 %v110, %v129
  %v142 = vmul.f32 %v111, %v129
  %v143 = vmul.f32 %v112, %v129
  %v144 = vmul.f32 %v113, %v129
  %v145 = vmul.f32 %v114, %v134
  %v146 = vmul.f32 %v115, %v134
  %v147 = vmul.f32 %v116, %v134
  %v148 = vmul.f32 %v117, %v134
  %v149 = vmul.f32 %v118, %v139
  %v150 = vmul.f32 %v119, %v139
  %v151 = vmul.f32 %v120, %v139
  %v152 = vmul.f32 %v121, %v139
  %v153 = vadd.f32 %v97, %v141
  %v154 = vadd.f32 %v98, %v142
  %v155 = vadd.f32 %v99, %v143
  %v156 = vadd.f32 %v100, %v144
  %v157 = vadd.f32 %v101, %v145
  %v158 = vadd.f32 %v102, %v146
  %v159 = vadd.f32 %v103, %v147
  %v160 = vadd.f32 %v104, %v148
  %v161 = vadd.f32 %v105, %v149
  %v162 = vadd.f32 %v106, %v150
  %v163 = vadd.f32 %v107, %v151
  %v164 = vadd.f32 %v108, %v152
  %s165 = scalar_lea.vmem %s1, 288
  %v166 = vld [vmem:[%s165] sm:$0xff]
  %v167 = vld [vmem:[%s165 + $0x8] sm:$0xff]
  %v168 = vld [vmem:[%s165 + $0x10] sm:$0xff]
  %v169 = vld [vmem:[%s165 + $0x18] sm:$0xff]
  %v170 = vld [vmem:[%s165 + $0x20] sm:$0xff]
  %v171 = vld [vmem:[%s165 + $0x28] sm:$0xff]
  %v172 = vld [vmem:[%s165 + $0x30] sm:$0xff]
  %v173 = vld [vmem:[%s165 + $0x38] sm:$0xff]
  %v174 = vld [vmem:[%s165 + $0x40] sm:$0x1]
  %v175 = vld [vmem:[%s165 + $0x48] sm:$0x1]
  %v176 = vld [vmem:[%s165 + $0x50] sm:$0x1]
  %v177 = vld [vmem:[%s165 + $0x58] sm:$0x1]
  %s178 = scalar_lea.vmem %s0, 72
  %v179 = vld [vmem:[%s178] sm:$0xff]
  %v180 = vld [vmem:[%s178 + $0x8] sm:$0xff]
  %v181 = vld [vmem:[%s178 + $0x10] sm:$0x1]
  %183 = vset.pattern.permute.xlu0 0
  %184 = vperm.xlu0 %183, %v179
  %v185 = vpop.permute.xlu0 %184
  %188 = vset.pattern.permute.xlu0 0
  %189 = vperm.xlu0 %188, %v180
  %v190 = vpop.permute.xlu0 %189
  %193 = vset.pattern.permute.xlu0 0
  %194 = vperm.xlu0 %193, %v181
  %v195 = vpop.permute.xlu0 %194
  %v197 = vmul.f32 %v166, %v185
  %v198 = vmul.f32 %v167, %v185
  %v199 = vmul.f32 %v168, %v185
  %v200 = vmul.f32 %v169, %v185
  %v201 = vmul.f32 %v170, %v190
  %v202 = vmul.f32 %v171, %v190
  %v203 = vmul.f32 %v172, %v190
  %v204 = vmul.f32 %v173, %v190
  %v205 = vmul.f32 %v174, %v195
  %v206 = vmul.f32 %v175, %v195
  %v207 = vmul.f32 %v176, %v195
  %v208 = vmul.f32 %v177, %v195
  %v209 = vadd.f32 %v153, %v197
  %v210 = vadd.f32 %v154, %v198
  %v211 = vadd.f32 %v155, %v199
  %v212 = vadd.f32 %v156, %v200
  %v213 = vadd.f32 %v157, %v201
  %v214 = vadd.f32 %v158, %v202
  %v215 = vadd.f32 %v159, %v203
  %v216 = vadd.f32 %v160, %v204
  %v217 = vadd.f32 %v161, %v205
  %v218 = vadd.f32 %v162, %v206
  %v219 = vadd.f32 %v163, %v207
  %v220 = vadd.f32 %v164, %v208
  %s221 = scalar_lea.vmem %s1, 384
  %v222 = vld [vmem:[%s221] sm:$0xff]
  %v223 = vld [vmem:[%s221 + $0x8] sm:$0xff]
  %v224 = vld [vmem:[%s221 + $0x10] sm:$0xff]
  %v225 = vld [vmem:[%s221 + $0x18] sm:$0xff]
  %v226 = vld [vmem:[%s221 + $0x20] sm:$0xff]
  %v227 = vld [vmem:[%s221 + $0x28] sm:$0xff]
  %v228 = vld [vmem:[%s221 + $0x30] sm:$0xff]
  %v229 = vld [vmem:[%s221 + $0x38] sm:$0xff]
  %v230 = vld [vmem:[%s221 + $0x40] sm:$0x1]
  %v231 = vld [vmem:[%s221 + $0x48] sm:$0x1]
  %v232 = vld [vmem:[%s221 + $0x50] sm:$0x1]
  %v233 = vld [vmem:[%s221 + $0x58] sm:$0x1]
  %s234 = scalar_lea.vmem %s0, 96
  %v235 = vld [vmem:[%s234] sm:$0xff]
  %v236 = vld [vmem:[%s234 + $0x8] sm:$0xff]
  %v237 = vld [vmem:[%s234 + $0x10] sm:$0x1]
  %239 = vset.pattern.permute.xlu0 0
  %240 = vperm.xlu0 %239, %v235
  %v241 = vpop.permute.xlu0 %240
  %244 = vset.pattern.permute.xlu0 0
  %245 = vperm.xlu0 %244, %v236
  %v246 = vpop.permute.xlu0 %245
  %249 = vset.pattern.permute.xlu0 0
  %250 = vperm.xlu0 %249, %v237
  %v251 = vpop.permute.xlu0 %250
  %v253 = vmul.f32 %v222, %v241
  %v254 = vmul.f32 %v223, %v241
  %v255 = vmul.f32 %v224, %v241
  %v256 = vmul.f32 %v225, %v241
  %v257 = vmul.f32 %v226, %v246
  %v258 = vmul.f32 %v227, %v246
  %v259 = vmul.f32 %v228, %v246
  %v260 = vmul.f32 %v229, %v246
  %v261 = vmul.f32 %v230, %v251
  %v262 = vmul.f32 %v231, %v251
  %v263 = vmul.f32 %v232, %v251
  %v264 = vmul.f32 %v233, %v251
  %v265 = vadd.f32 %v209, %v253
  %v266 = vadd.f32 %v210, %v254
  %v267 = vadd.f32 %v211, %v255
  %v268 = vadd.f32 %v212, %v256
  %v269 = vadd.f32 %v213, %v257
  %v270 = vadd.f32 %v214, %v258
  %v271 = vadd.f32 %v215, %v259
  %v272 = vadd.f32 %v216, %v260
  %v273 = vadd.f32 %v217, %v261
  %v274 = vadd.f32 %v218, %v262
  %v275 = vadd.f32 %v219, %v263
  %v276 = vadd.f32 %v220, %v264
  %s277 = scalar_lea.vmem %s1, 480
  %v278 = vld [vmem:[%s277] sm:$0xff]
  %v279 = vld [vmem:[%s277 + $0x8] sm:$0xff]
  %v280 = vld [vmem:[%s277 + $0x10] sm:$0xff]
  %v281 = vld [vmem:[%s277 + $0x18] sm:$0xff]
  %v282 = vld [vmem:[%s277 + $0x20] sm:$0xff]
  %v283 = vld [vmem:[%s277 + $0x28] sm:$0xff]
  %v284 = vld [vmem:[%s277 + $0x30] sm:$0xff]
  %v285 = vld [vmem:[%s277 + $0x38] sm:$0xff]
  %v286 = vld [vmem:[%s277 + $0x40] sm:$0x1]
  %v287 = vld [vmem:[%s277 + $0x48] sm:$0x1]
  %v288 = vld [vmem:[%s277 + $0x50] sm:$0x1]
  %v289 = vld [vmem:[%s277 + $0x58] sm:$0x1]
  %s290 = scalar_lea.vmem %s0, 120
  %v291 = vld [vmem:[%s290] sm:$0xff]
  %v292 = vld [vmem:[%s290 + $0x8] sm:$0xff]
  %v293 = vld [vmem:[%s290 + $0x10] sm:$0x1]
  %295 = vset.pattern.permute.xlu0 0
  %296 = vperm.xlu0 %295, %v291
  %v297 = vpop.permute.xlu0 %296
  %300 = vset.pattern.permute.xlu0 0
  %301 = vperm.xlu0 %300, %v292
  %v302 = vpop.permute.xlu0 %301
  %305 = vset.pattern.permute.xlu0 0
  %306 = vperm.xlu0 %305, %v293
  %v307 = vpop.permute.xlu0 %306
  %v309 = vmul.f32 %v278, %v297
  %v310 = vmul.f32 %v279, %v297
  %v311 = vmul.f32 %v280, %v297
  %v312 = vmul.f32 %v281, %v297
  %v313 = vmul.f32 %v282, %v302
  %v314 = vmul.f32 %v283, %v302
  %v315 = vmul.f32 %v284, %v302
  %v316 = vmul.f32 %v285, %v302
  %v317 = vmul.f32 %v286, %v307
  %v318 = vmul.f32 %v287, %v307
  %v319 = vmul.f32 %v288, %v307
  %v320 = vmul.f32 %v289, %v307
  %v321 = vadd.f32 %v265, %v309
  %v322 = vadd.f32 %v266, %v310
  %v323 = vadd.f32 %v267, %v311
  %v324 = vadd.f32 %v268, %v312
  %v325 = vadd.f32 %v269, %v313
  %v326 = vadd.f32 %v270, %v314
  %v327 = vadd.f32 %v271, %v315
  %v328 = vadd.f32 %v272, %v316
  %v329 = vadd.f32 %v273, %v317
  %v330 = vadd.f32 %v274, %v318
  %v331 = vadd.f32 %v275, %v319
  %v332 = vadd.f32 %v276, %v320
  %s333 = scalar_lea.vmem %s1, 576
  %v334 = vld [vmem:[%s333] sm:$0xff]
  %v335 = vld [vmem:[%s333 + $0x8] sm:$0xff]
  %v336 = vld [vmem:[%s333 + $0x10] sm:$0xff]
  %v337 = vld [vmem:[%s333 + $0x18] sm:$0xff]
  %v338 = vld [vmem:[%s333 + $0x20] sm:$0xff]
  %v339 = vld [vmem:[%s333 + $0x28] sm:$0xff]
  %v340 = vld [vmem:[%s333 + $0x30] sm:$0xff]
  %v341 = vld [vmem:[%s333 + $0x38] sm:$0xff]
  %v342 = vld [vmem:[%s333 + $0x40] sm:$0x1]
  %v343 = vld [vmem:[%s333 + $0x48] sm:$0x1]
  %v344 = vld [vmem:[%s333 + $0x50] sm:$0x1]
  %v345 = vld [vmem:[%s333 + $0x58] sm:$0x1]
  %s346 = scalar_lea.vmem %s0, 144
  %v347 = vld [vmem:[%s346] sm:$0xff]
  %v348 = vld [vmem:[%s346 + $0x8] sm:$0xff]
  %v349 = vld [vmem:[%s346 + $0x10] sm:$0x1]
  %351 = vset.pattern.permute.xlu0 0
  %352 = vperm.xlu0 %351, %v347
  %v353 = vpop.permute.xlu0 %352
  %356 = vset.pattern.permute.xlu0 0
  %357 = vperm.xlu0 %356, %v348
  %v358 = vpop.permute.xlu0 %357
  %361 = vset.pattern.permute.xlu0 0
  %362 = vperm.xlu0 %361, %v349
  %v363 = vpop.permute.xlu0 %362
  %v365 = vmul.f32 %v334, %v353
  %v366 = vmul.f32 %v335, %v353
  %v367 = vmul.f32 %v336, %v353
  %v368 = vmul.f32 %v337, %v353
  %v369 = vmul.f32 %v338, %v358
  %v370 = vmul.f32 %v339, %v358
  %v371 = vmul.f32 %v340, %v358
  %v372 = vmul.f32 %v341, %v358
  %v373 = vmul.f32 %v342, %v363
  %v374 = vmul.f32 %v343, %v363
  %v375 = vmul.f32 %v344, %v363
  %v376 = vmul.f32 %v345, %v363
  %v377 = vadd.f32 %v321, %v365
  %v378 = vadd.f32 %v322, %v366
  %v379 = vadd.f32 %v323, %v367
  %v380 = vadd.f32 %v324, %v368
  %v381 = vadd.f32 %v325, %v369
  %v382 = vadd.f32 %v326, %v370
  %v383 = vadd.f32 %v327, %v371
  %v384 = vadd.f32 %v328, %v372
  %v385 = vadd.f32 %v329, %v373
  %v386 = vadd.f32 %v330, %v374
  %v387 = vadd.f32 %v331, %v375
  %v388 = vadd.f32 %v332, %v376
  %s389 = scalar_lea.vmem %s1, 672
  %v390 = vld [vmem:[%s389] sm:$0xff]
  %v391 = vld [vmem:[%s389 + $0x8] sm:$0xff]
  %v392 = vld [vmem:[%s389 + $0x10] sm:$0xff]
  %v393 = vld [vmem:[%s389 + $0x18] sm:$0xff]
  %v394 = vld [vmem:[%s389 + $0x20] sm:$0xff]
  %v395 = vld [vmem:[%s389 + $0x28] sm:$0xff]
  %v396 = vld [vmem:[%s389 + $0x30] sm:$0xff]
  %v397 = vld [vmem:[%s389 + $0x38] sm:$0xff]
  %v398 = vld [vmem:[%s389 + $0x40] sm:$0x1]
  %v399 = vld [vmem:[%s389 + $0x48] sm:$0x1]
  %v400 = vld [vmem:[%s389 + $0x50] sm:$0x1]
  %v401 = vld [vmem:[%s389 + $0x58] sm:$0x1]
  %s402 = scalar_lea.vmem %s0, 168
  %v403 = vld [vmem:[%s402] sm:$0xff]
  %v404 = vld [vmem:[%s402 + $0x8] sm:$0xff]
  %v405 = vld [vmem:[%s402 + $0x10] sm:$0x1]
  %407 = vset.pattern.permute.xlu0 0
  %408 = vperm.xlu0 %407, %v403
  %v409 = vpop.permute.xlu0 %408
  %412 = vset.pattern.permute.xlu0 0
  %413 = vperm.xlu0 %412, %v404
  %v414 = vpop.permute.xlu0 %413
  %417 = vset.pattern.permute.xlu0 0
  %418 = vperm.xlu0 %417, %v405
  %v419 = vpop.permute.xlu0 %418
  %v421 = vmul.f32 %v390, %v409
  %v422 = vmul.f32 %v391, %v409
  %v423 = vmul.f32 %v392, %v409
  %v424 = vmul.f32 %v393, %v409
  %v425 = vmul.f32 %v394, %v414
  %v426 = vmul.f32 %v395, %v414
  %v427 = vmul.f32 %v396, %v414
  %v428 = vmul.f32 %v397, %v414
  %v429 = vmul.f32 %v398, %v419
  %v430 = vmul.f32 %v399, %v419
  %v431 = vmul.f32 %v400, %v419
  %v432 = vmul.f32 %v401, %v419
  %v433 = vadd.f32 %v377, %v421
  %v434 = vadd.f32 %v378, %v422
  %v435 = vadd.f32 %v379, %v423
  %v436 = vadd.f32 %v380, %v424
  %v437 = vadd.f32 %v381, %v425
  %v438 = vadd.f32 %v382, %v426
  %v439 = vadd.f32 %v383, %v427
  %v440 = vadd.f32 %v384, %v428
  %v441 = vadd.f32 %v385, %v429
  %v442 = vadd.f32 %v386, %v430
  %v443 = vadd.f32 %v387, %v431
  %v444 = vadd.f32 %v388, %v432
  %s445 = scalar_lea.vmem %s1, 768
  %v446 = vld [vmem:[%s445] sm:$0xff]
  %v447 = vld [vmem:[%s445 + $0x8] sm:$0xff]
  %v448 = vld [vmem:[%s445 + $0x10] sm:$0xff]
  %v449 = vld [vmem:[%s445 + $0x18] sm:$0xff]
  %v450 = vld [vmem:[%s445 + $0x20] sm:$0xff]
  %v451 = vld [vmem:[%s445 + $0x28] sm:$0xff]
  %v452 = vld [vmem:[%s445 + $0x30] sm:$0xff]
  %v453 = vld [vmem:[%s445 + $0x38] sm:$0xff]
  %v454 = vld [vmem:[%s445 + $0x40] sm:$0x1]
  %v455 = vld [vmem:[%s445 + $0x48] sm:$0x1]
  %v456 = vld [vmem:[%s445 + $0x50] sm:$0x1]
  %v457 = vld [vmem:[%s445 + $0x58] sm:$0x1]
  %s458 = scalar_lea.vmem %s0, 192
  %v459 = vld [vmem:[%s458] sm:$0xff]
  %v460 = vld [vmem:[%s458 + $0x8] sm:$0xff]
  %v461 = vld [vmem:[%s458 + $0x10] sm:$0x1]
  %463 = vset.pattern.permute.xlu0 0
  %464 = vperm.xlu0 %463, %v459
  %v465 = vpop.permute.xlu0 %464
  %468 = vset.pattern.permute.xlu0 0
  %469 = vperm.xlu0 %468, %v460
  %v470 = vpop.permute.xlu0 %469
  %473 = vset.pattern.permute.xlu0 0
  %474 = vperm.xlu0 %473, %v461
  %v475 = vpop.permute.xlu0 %474
  %v477 = vmul.f32 %v446, %v465
  %v478 = vmul.f32 %v447, %v465
  %v479 = vmul.f32 %v448, %v465
  %v480 = vmul.f32 %v449, %v465
  %v481 = vmul.f32 %v450, %v470
  %v482 = vmul.f32 %v451, %v470
  %v483 = vmul.f32 %v452, %v470
  %v484 = vmul.f32 %v453, %v470
  %v485 = vmul.f32 %v454, %v475
  %v486 = vmul.f32 %v455, %v475
  %v487 = vmul.f32 %v456, %v475
  %v488 = vmul.f32 %v457, %v475
  %v489 = vadd.f32 %v433, %v477
  %v490 = vadd.f32 %v434, %v478
  %v491 = vadd.f32 %v435, %v479
  %v492 = vadd.f32 %v436, %v480
  %v493 = vadd.f32 %v437, %v481
  %v494 = vadd.f32 %v438, %v482
  %v495 = vadd.f32 %v439, %v483
  %v496 = vadd.f32 %v440, %v484
  %v497 = vadd.f32 %v441, %v485
  %v498 = vadd.f32 %v442, %v486
  %v499 = vadd.f32 %v443, %v487
  %v500 = vadd.f32 %v444, %v488
  %s501 = scalar_lea.vmem %s1, 864
  %v502 = vld [vmem:[%s501] sm:$0xff]
  %v503 = vld [vmem:[%s501 + $0x8] sm:$0xff]
  %v504 = vld [vmem:[%s501 + $0x10] sm:$0xff]
  %v505 = vld [vmem:[%s501 + $0x18] sm:$0xff]
  %v506 = vld [vmem:[%s501 + $0x20] sm:$0xff]
  %v507 = vld [vmem:[%s501 + $0x28] sm:$0xff]
  %v508 = vld [vmem:[%s501 + $0x30] sm:$0xff]
  %v509 = vld [vmem:[%s501 + $0x38] sm:$0xff]
  %v510 = vld [vmem:[%s501 + $0x40] sm:$0x1]
  %v511 = vld [vmem:[%s501 + $0x48] sm:$0x1]
  %v512 = vld [vmem:[%s501 + $0x50] sm:$0x1]
  %v513 = vld [vmem:[%s501 + $0x58] sm:$0x1]
  %s514 = scalar_lea.vmem %s0, 216
  %v515 = vld [vmem:[%s514] sm:$0xff]
  %v516 = vld [vmem:[%s514 + $0x8] sm:$0xff]
  %v517 = vld [vmem:[%s514 + $0x10] sm:$0x1]
  %519 = vset.pattern.permute.xlu0 0
  %520 = vperm.xlu0 %519, %v515
  %v521 = vpop.permute.xlu0 %520
  %524 = vset.pattern.permute.xlu0 0
  %525 = vperm.xlu0 %524, %v516
  %v526 = vpop.permute.xlu0 %525
  %529 = vset.pattern.permute.xlu0 0
  %530 = vperm.xlu0 %529, %v517
  %v531 = vpop.permute.xlu0 %530
  %v533 = vmul.f32 %v502, %v521
  %v534 = vmul.f32 %v503, %v521
  %v535 = vmul.f32 %v504, %v521
  %v536 = vmul.f32 %v505, %v521
  %v537 = vmul.f32 %v506, %v526
  %v538 = vmul.f32 %v507, %v526
  %v539 = vmul.f32 %v508, %v526
  %v540 = vmul.f32 %v509, %v526
  %v541 = vmul.f32 %v510, %v531
  %v542 = vmul.f32 %v511, %v531
  %v543 = vmul.f32 %v512, %v531
  %v544 = vmul.f32 %v513, %v531
  %v545 = vadd.f32 %v489, %v533
  %v546 = vadd.f32 %v490, %v534
  %v547 = vadd.f32 %v491, %v535
  %v548 = vadd.f32 %v492, %v536
  %v549 = vadd.f32 %v493, %v537
  %v550 = vadd.f32 %v494, %v538
  %v551 = vadd.f32 %v495, %v539
  %v552 = vadd.f32 %v496, %v540
  %v553 = vadd.f32 %v497, %v541
  %v554 = vadd.f32 %v498, %v542
  %v555 = vadd.f32 %v499, %v543
  %v556 = vadd.f32 %v500, %v544
  %s557 = scalar_lea.vmem %s1, 960
  %v558 = vld [vmem:[%s557] sm:$0xff]
  %v559 = vld [vmem:[%s557 + $0x8] sm:$0xff]
  %v560 = vld [vmem:[%s557 + $0x10] sm:$0xff]
  %v561 = vld [vmem:[%s557 + $0x18] sm:$0xff]
  %v562 = vld [vmem:[%s557 + $0x20] sm:$0xff]
  %v563 = vld [vmem:[%s557 + $0x28] sm:$0xff]
  %v564 = vld [vmem:[%s557 + $0x30] sm:$0xff]
  %v565 = vld [vmem:[%s557 + $0x38] sm:$0xff]
  %v566 = vld [vmem:[%s557 + $0x40] sm:$0x1]
  %v567 = vld [vmem:[%s557 + $0x48] sm:$0x1]
  %v568 = vld [vmem:[%s557 + $0x50] sm:$0x1]
  %v569 = vld [vmem:[%s557 + $0x58] sm:$0x1]
  %s570 = scalar_lea.vmem %s0, 240
  %v571 = vld [vmem:[%s570] sm:$0xff]
  %v572 = vld [vmem:[%s570 + $0x8] sm:$0xff]
  %v573 = vld [vmem:[%s570 + $0x10] sm:$0x1]
  %575 = vset.pattern.permute.xlu0 0
  %576 = vperm.xlu0 %575, %v571
  %v577 = vpop.permute.xlu0 %576
  %580 = vset.pattern.permute.xlu0 0
  %581 = vperm.xlu0 %580, %v572
  %v582 = vpop.permute.xlu0 %581
  %585 = vset.pattern.permute.xlu0 0
  %586 = vperm.xlu0 %585, %v573
  %v587 = vpop.permute.xlu0 %586
  %v589 = vmul.f32 %v558, %v577
  %v590 = vmul.f32 %v559, %v577
  %v591 = vmul.f32 %v560, %v577
  %v592 = vmul.f32 %v561, %v577
  %v593 = vmul.f32 %v562, %v582
  %v594 = vmul.f32 %v563, %v582
  %v595 = vmul.f32 %v564, %v582
  %v596 = vmul.f32 %v565, %v582
  %v597 = vmul.f32 %v566, %v587
  %v598 = vmul.f32 %v567, %v587
  %v599 = vmul.f32 %v568, %v587
  %v600 = vmul.f32 %v569, %v587
  %v601 = vadd.f32 %v545, %v589
  %v602 = vadd.f32 %v546, %v590
  %v603 = vadd.f32 %v547, %v591
  %v604 = vadd.f32 %v548, %v592
  %v605 = vadd.f32 %v549, %v593
  %v606 = vadd.f32 %v550, %v594
  %v607 = vadd.f32 %v551, %v595
  %v608 = vadd.f32 %v552, %v596
  %v609 = vadd.f32 %v553, %v597
  %v610 = vadd.f32 %v554, %v598
  %v611 = vadd.f32 %v555, %v599
  %v612 = vadd.f32 %v556, %v600
  %s613 = scalar_lea.vmem %s1, 1056
  %v614 = vld [vmem:[%s613] sm:$0xff]
  %v615 = vld [vmem:[%s613 + $0x8] sm:$0xff]
  %v616 = vld [vmem:[%s613 + $0x10] sm:$0xff]
  %v617 = vld [vmem:[%s613 + $0x18] sm:$0xff]
  %v618 = vld [vmem:[%s613 + $0x20] sm:$0xff]
  %v619 = vld [vmem:[%s613 + $0x28] sm:$0xff]
  %v620 = vld [vmem:[%s613 + $0x30] sm:$0xff]
  %v621 = vld [vmem:[%s613 + $0x38] sm:$0xff]
  %v622 = vld [vmem:[%s613 + $0x40] sm:$0x1]
  %v623 = vld [vmem:[%s613 + $0x48] sm:$0x1]
  %v624 = vld [vmem:[%s613 + $0x50] sm:$0x1]
  %v625 = vld [vmem:[%s613 + $0x58] sm:$0x1]
  %s626 = scalar_lea.vmem %s0, 264
  %v627 = vld [vmem:[%s626] sm:$0xff]
  %v628 = vld [vmem:[%s626 + $0x8] sm:$0xff]
  %v629 = vld [vmem:[%s626 + $0x10] sm:$0x1]
  %631 = vset.pattern.permute.xlu0 0
  %632 = vperm.xlu0 %631, %v627
  %v633 = vpop.permute.xlu0 %632
  %636 = vset.pattern.permute.xlu0 0
  %637 = vperm.xlu0 %636, %v628
  %v638 = vpop.permute.xlu0 %637
  %641 = vset.pattern.permute.xlu0 0
  %642 = vperm.xlu0 %641, %v629
  %v643 = vpop.permute.xlu0 %642
  %v645 = vmul.f32 %v614, %v633
  %v646 = vmul.f32 %v615, %v633
  %v647 = vmul.f32 %v616, %v633
  %v648 = vmul.f32 %v617, %v633
  %v649 = vmul.f32 %v618, %v638
  %v650 = vmul.f32 %v619, %v638
  %v651 = vmul.f32 %v620, %v638
  %v652 = vmul.f32 %v621, %v638
  %v653 = vmul.f32 %v622, %v643
  %v654 = vmul.f32 %v623, %v643
  %v655 = vmul.f32 %v624, %v643
  %v656 = vmul.f32 %v625, %v643
  %v657 = vadd.f32 %v601, %v645
  %v658 = vadd.f32 %v602, %v646
  %v659 = vadd.f32 %v603, %v647
  %v660 = vadd.f32 %v604, %v648
  %v661 = vadd.f32 %v605, %v649
  %v662 = vadd.f32 %v606, %v650
  %v663 = vadd.f32 %v607, %v651
  %v664 = vadd.f32 %v608, %v652
  %v665 = vadd.f32 %v609, %v653
  %v666 = vadd.f32 %v610, %v654
  %v667 = vadd.f32 %v611, %v655
  %v668 = vadd.f32 %v612, %v656
  %s669 = scalar_lea.vmem %s1, 1152
  %v670 = vld [vmem:[%s669] sm:$0xff]
  %v671 = vld [vmem:[%s669 + $0x8] sm:$0xff]
  %v672 = vld [vmem:[%s669 + $0x10] sm:$0xff]
  %v673 = vld [vmem:[%s669 + $0x18] sm:$0xff]
  %v674 = vld [vmem:[%s669 + $0x20] sm:$0xff]
  %v675 = vld [vmem:[%s669 + $0x28] sm:$0xff]
  %v676 = vld [vmem:[%s669 + $0x30] sm:$0xff]
  %v677 = vld [vmem:[%s669 + $0x38] sm:$0xff]
  %v678 = vld [vmem:[%s669 + $0x40] sm:$0x1]
  %v679 = vld [vmem:[%s669 + $0x48] sm:$0x1]
  %v680 = vld [vmem:[%s669 + $0x50] sm:$0x1]
  %v681 = vld [vmem:[%s669 + $0x58] sm:$0x1]
  %s682 = scalar_lea.vmem %s0, 288
  %v683 = vld [vmem:[%s682] sm:$0xff]
  %v684 = vld [vmem:[%s682 + $0x8] sm:$0xff]
  %v685 = vld [vmem:[%s682 + $0x10] sm:$0x1]
  %687 = vset.pattern.permute.xlu0 0
  %688 = vperm.xlu0 %687, %v683
  %v689 = vpop.permute.xlu0 %688
  %692 = vset.pattern.permute.xlu0 0
  %693 = vperm.xlu0 %692, %v684
  %v694 = vpop.permute.xlu0 %693
  %697 = vset.pattern.permute.xlu0 0
  %698 = vperm.xlu0 %697, %v685
  %v699 = vpop.permute.xlu0 %698
  %v701 = vmul.f32 %v670, %v689
  %v702 = vmul.f32 %v671, %v689
  %v703 = vmul.f32 %v672, %v689
  %v704 = vmul.f32 %v673, %v689
  %v705 = vmul.f32 %v674, %v694
  %v706 = vmul.f32 %v675, %v694
  %v707 = vmul.f32 %v676, %v694
  %v708 = vmul.f32 %v677, %v694
  %v709 = vmul.f32 %v678, %v699
  %v710 = vmul.f32 %v679, %v699
  %v711 = vmul.f32 %v680, %v699
  %v712 = vmul.f32 %v681, %v699
  %v713 = vadd.f32 %v657, %v701
  %v714 = vadd.f32 %v658, %v702
  %v715 = vadd.f32 %v659, %v703
  %v716 = vadd.f32 %v660, %v704
  %v717 = vadd.f32 %v661, %v705
  %v718 = vadd.f32 %v662, %v706
  %v719 = vadd.f32 %v663, %v707
  %v720 = vadd.f32 %v664, %v708
  %v721 = vadd.f32 %v665, %v709
  %v722 = vadd.f32 %v666, %v710
  %v723 = vadd.f32 %v667, %v711
  %v724 = vadd.f32 %v668, %v712
  %s725 = scalar_lea.vmem %s1, 1248
  %v726 = vld [vmem:[%s725] sm:$0xff]
  %v727 = vld [vmem:[%s725 + $0x8] sm:$0xff]
  %v728 = vld [vmem:[%s725 + $0x10] sm:$0xff]
  %v729 = vld [vmem:[%s725 + $0x18] sm:$0xff]
  %v730 = vld [vmem:[%s725 + $0x20] sm:$0xff]
  %v731 = vld [vmem:[%s725 + $0x28] sm:$0xff]
  %v732 = vld [vmem:[%s725 + $0x30] sm:$0xff]
  %v733 = vld [vmem:[%s725 + $0x38] sm:$0xff]
  %v734 = vld [vmem:[%s725 + $0x40] sm:$0x1]
  %v735 = vld [vmem:[%s725 + $0x48] sm:$0x1]
  %v736 = vld [vmem:[%s725 + $0x50] sm:$0x1]
  %v737 = vld [vmem:[%s725 + $0x58] sm:$0x1]
  %s738 = scalar_lea.vmem %s0, 312
  %v739 = vld [vmem:[%s738] sm:$0xff]
  %v740 = vld [vmem:[%s738 + $0x8] sm:$0xff]
  %v741 = vld [vmem:[%s738 + $0x10] sm:$0x1]
  %743 = vset.pattern.permute.xlu0 0
  %744 = vperm.xlu0 %743, %v739
  %v745 = vpop.permute.xlu0 %744
  %748 = vset.pattern.permute.xlu0 0
  %749 = vperm.xlu0 %748, %v740
  %v750 = vpop.permute.xlu0 %749
  %753 = vset.pattern.permute.xlu0 0
  %754 = vperm.xlu0 %753, %v741
  %v755 = vpop.permute.xlu0 %754
  %v757 = vmul.f32 %v726, %v745
  %v758 = vmul.f32 %v727, %v745
  %v759 = vmul.f32 %v728, %v745
  %v760 = vmul.f32 %v729, %v745
  %v761 = vmul.f32 %v730, %v750
  %v762 = vmul.f32 %v731, %v750
  %v763 = vmul.f32 %v732, %v750
  %v764 = vmul.f32 %v733, %v750
  %v765 = vmul.f32 %v734, %v755
  %v766 = vmul.f32 %v735, %v755
  %v767 = vmul.f32 %v736, %v755
  %v768 = vmul.f32 %v737, %v755
  %v769 = vadd.f32 %v713, %v757
  %v770 = vadd.f32 %v714, %v758
  %v771 = vadd.f32 %v715, %v759
  %v772 = vadd.f32 %v716, %v760
  %v773 = vadd.f32 %v717, %v761
  %v774 = vadd.f32 %v718, %v762
  %v775 = vadd.f32 %v719, %v763
  %v776 = vadd.f32 %v720, %v764
  %v777 = vadd.f32 %v721, %v765
  %v778 = vadd.f32 %v722, %v766
  %v779 = vadd.f32 %v723, %v767
  %v780 = vadd.f32 %v724, %v768
  %s781 = scalar_lea.vmem %s1, 1344
  %v782 = vld [vmem:[%s781] sm:$0xff]
  %v783 = vld [vmem:[%s781 + $0x8] sm:$0xff]
  %v784 = vld [vmem:[%s781 + $0x10] sm:$0xff]
  %v785 = vld [vmem:[%s781 + $0x18] sm:$0xff]
  %v786 = vld [vmem:[%s781 + $0x20] sm:$0xff]
  %v787 = vld [vmem:[%s781 + $0x28] sm:$0xff]
  %v788 = vld [vmem:[%s781 + $0x30] sm:$0xff]
  %v789 = vld [vmem:[%s781 + $0x38] sm:$0xff]
  %v790 = vld [vmem:[%s781 + $0x40] sm:$0x1]
  %v791 = vld [vmem:[%s781 + $0x48] sm:$0x1]
  %v792 = vld [vmem:[%s781 + $0x50] sm:$0x1]
  %v793 = vld [vmem:[%s781 + $0x58] sm:$0x1]
  %s794 = scalar_lea.vmem %s0, 336
  %v795 = vld [vmem:[%s794] sm:$0xff]
  %v796 = vld [vmem:[%s794 + $0x8] sm:$0xff]
  %v797 = vld [vmem:[%s794 + $0x10] sm:$0x1]
  %799 = vset.pattern.permute.xlu0 0
  %800 = vperm.xlu0 %799, %v795
  %v801 = vpop.permute.xlu0 %800
  %804 = vset.pattern.permute.xlu0 0
  %805 = vperm.xlu0 %804, %v796
  %v806 = vpop.permute.xlu0 %805
  %809 = vset.pattern.permute.xlu0 0
  %810 = vperm.xlu0 %809, %v797
  %v811 = vpop.permute.xlu0 %810
  %v813 = vmul.f32 %v782, %v801
  %v814 = vmul.f32 %v783, %v801
  %v815 = vmul.f32 %v784, %v801
  %v816 = vmul.f32 %v785, %v801
  %v817 = vmul.f32 %v786, %v806
  %v818 = vmul.f32 %v787, %v806
  %v819 = vmul.f32 %v788, %v806
  %v820 = vmul.f32 %v789, %v806
  %v821 = vmul.f32 %v790, %v811
  %v822 = vmul.f32 %v791, %v811
  %v823 = vmul.f32 %v792, %v811
  %v824 = vmul.f32 %v793, %v811
  %v825 = vadd.f32 %v769, %v813
  %v826 = vadd.f32 %v770, %v814
  %v827 = vadd.f32 %v771, %v815
  %v828 = vadd.f32 %v772, %v816
  %v829 = vadd.f32 %v773, %v817
  %v830 = vadd.f32 %v774, %v818
  %v831 = vadd.f32 %v775, %v819
  %v832 = vadd.f32 %v776, %v820
  %v833 = vadd.f32 %v777, %v821
  %v834 = vadd.f32 %v778, %v822
  %v835 = vadd.f32 %v779, %v823
  %v836 = vadd.f32 %v780, %v824
  %s837 = scalar_lea.vmem %s1, 1440
  %v838 = vld [vmem:[%s837] sm:$0xff]
  %v839 = vld [vmem:[%s837 + $0x8] sm:$0xff]
  %v840 = vld [vmem:[%s837 + $0x10] sm:$0xff]
  %v841 = vld [vmem:[%s837 + $0x18] sm:$0xff]
  %v842 = vld [vmem:[%s837 + $0x20] sm:$0xff]
  %v843 = vld [vmem:[%s837 + $0x28] sm:$0xff]
  %v844 = vld [vmem:[%s837 + $0x30] sm:$0xff]
  %v845 = vld [vmem:[%s837 + $0x38] sm:$0xff]
  %v846 = vld [vmem:[%s837 + $0x40] sm:$0x1]
  %v847 = vld [vmem:[%s837 + $0x48] sm:$0x1]
  %v848 = vld [vmem:[%s837 + $0x50] sm:$0x1]
  %v849 = vld [vmem:[%s837 + $0x58] sm:$0x1]
  %s850 = scalar_lea.vmem %s0, 360
  %v851 = vld [vmem:[%s850] sm:$0xff]
  %v852 = vld [vmem:[%s850 + $0x8] sm:$0xff]
  %v853 = vld [vmem:[%s850 + $0x10] sm:$0x1]
  %855 = vset.pattern.permute.xlu0 0
  %856 = vperm.xlu0 %855, %v851
  %v857 = vpop.permute.xlu0 %856
  %860 = vset.pattern.permute.xlu0 0
  %861 = vperm.xlu0 %860, %v852
  %v862 = vpop.permute.xlu0 %861
  %865 = vset.pattern.permute.xlu0 0
  %866 = vperm.xlu0 %865, %v853
  %v867 = vpop.permute.xlu0 %866
  %v869 = vmul.f32 %v838, %v857
  %v870 = vmul.f32 %v839, %v857
  %v871 = vmul.f32 %v840, %v857
  %v872 = vmul.f32 %v841, %v857
  %v873 = vmul.f32 %v842, %v862
  %v874 = vmul.f32 %v843, %v862
  %v875 = vmul.f32 %v844, %v862
  %v876 = vmul.f32 %v845, %v862
  %v877 = vmul.f32 %v846, %v867
  %v878 = vmul.f32 %v847, %v867
  %v879 = vmul.f32 %v848, %v867
  %v880 = vmul.f32 %v849, %v867
  %v881 = vadd.f32 %v825, %v869
  %v882 = vadd.f32 %v826, %v870
  %v883 = vadd.f32 %v827, %v871
  %v884 = vadd.f32 %v828, %v872
  %v885 = vadd.f32 %v829, %v873
  %v886 = vadd.f32 %v830, %v874
  %v887 = vadd.f32 %v831, %v875
  %v888 = vadd.f32 %v832, %v876
  %v889 = vadd.f32 %v833, %v877
  %v890 = vadd.f32 %v834, %v878
  %v891 = vadd.f32 %v835, %v879
  %v892 = vadd.f32 %v836, %v880
  %s893 = scalar_lea.vmem %s1, 1536
  %v894 = vld [vmem:[%s893] sm:$0xff]
  %v895 = vld [vmem:[%s893 + $0x8] sm:$0xff]
  %v896 = vld [vmem:[%s893 + $0x10] sm:$0xff]
  %v897 = vld [vmem:[%s893 + $0x18] sm:$0xff]
  %v898 = vld [vmem:[%s893 + $0x20] sm:$0xff]
  %v899 = vld [vmem:[%s893 + $0x28] sm:$0xff]
  %v900 = vld [vmem:[%s893 + $0x30] sm:$0xff]
  %v901 = vld [vmem:[%s893 + $0x38] sm:$0xff]
  %v902 = vld [vmem:[%s893 + $0x40] sm:$0x1]
  %v903 = vld [vmem:[%s893 + $0x48] sm:$0x1]
  %v904 = vld [vmem:[%s893 + $0x50] sm:$0x1]
  %v905 = vld [vmem:[%s893 + $0x58] sm:$0x1]
  %s906 = scalar_lea.vmem %s0, 384
  %v907 = vld [vmem:[%s906] sm:$0xff]
  %v908 = vld [vmem:[%s906 + $0x8] sm:$0xff]
  %v909 = vld [vmem:[%s906 + $0x10] sm:$0x1]
  %911 = vset.pattern.permute.xlu0 0
  %912 = vperm.xlu0 %911, %v907
  %v913 = vpop.permute.xlu0 %912
  %916 = vset.pattern.permute.xlu0 0
  %917 = vperm.xlu0 %916, %v908
  %v918 = vpop.permute.xlu0 %917
  %921 = vset.pattern.permute.xlu0 0
  %922 = vperm.xlu0 %921, %v909
  %v923 = vpop.permute.xlu0 %922
  %v925 = vmul.f32 %v894, %v913
  %v926 = vmul.f32 %v895, %v913
  %v927 = vmul.f32 %v896, %v913
  %v928 = vmul.f32 %v897, %v913
  %v929 = vmul.f32 %v898, %v918
  %v930 = vmul.f32 %v899, %v918
  %v931 = vmul.f32 %v900, %v918
  %v932 = vmul.f32 %v901, %v918
  %v933 = vmul.f32 %v902, %v923
  %v934 = vmul.f32 %v903, %v923
  %v935 = vmul.f32 %v904, %v923
  %v936 = vmul.f32 %v905, %v923
  %v937 = vadd.f32 %v881, %v925
  %v938 = vadd.f32 %v882, %v926
  %v939 = vadd.f32 %v883, %v927
  %v940 = vadd.f32 %v884, %v928
  %v941 = vadd.f32 %v885, %v929
  %v942 = vadd.f32 %v886, %v930
  %v943 = vadd.f32 %v887, %v931
  %v944 = vadd.f32 %v888, %v932
  %v945 = vadd.f32 %v889, %v933
  %v946 = vadd.f32 %v890, %v934
  %v947 = vadd.f32 %v891, %v935
  %v948 = vadd.f32 %v892, %v936
  %s949 = scalar_lea.vmem %s1, 1632
  %v950 = vld [vmem:[%s949] sm:$0xff]
  %v951 = vld [vmem:[%s949 + $0x8] sm:$0xff]
  %v952 = vld [vmem:[%s949 + $0x10] sm:$0xff]
  %v953 = vld [vmem:[%s949 + $0x18] sm:$0xff]
  %v954 = vld [vmem:[%s949 + $0x20] sm:$0xff]
  %v955 = vld [vmem:[%s949 + $0x28] sm:$0xff]
  %v956 = vld [vmem:[%s949 + $0x30] sm:$0xff]
  %v957 = vld [vmem:[%s949 + $0x38] sm:$0xff]
  %v958 = vld [vmem:[%s949 + $0x40] sm:$0x1]
  %v959 = vld [vmem:[%s949 + $0x48] sm:$0x1]
  %v960 = vld [vmem:[%s949 + $0x50] sm:$0x1]
  %v961 = vld [vmem:[%s949 + $0x58] sm:$0x1]
  %s962 = scalar_lea.vmem %s0, 408
  %v963 = vld [vmem:[%s962] sm:$0xff]
  %v964 = vld [vmem:[%s962 + $0x8] sm:$0xff]
  %v965 = vld [vmem:[%s962 + $0x10] sm:$0x1]
  %967 = vset.pattern.permute.xlu0 0
  %968 = vperm.xlu0 %967, %v963
  %v969 = vpop.permute.xlu0 %968
  %972 = vset.pattern.permute.xlu0 0
  %973 = vperm.xlu0 %972, %v964
  %v974 = vpop.permute.xlu0 %973
  %977 = vset.pattern.permute.xlu0 0
  %978 = vperm.xlu0 %977, %v965
  %v979 = vpop.permute.xlu0 %978
  %v981 = vmul.f32 %v950, %v969
  %v982 = vmul.f32 %v951, %v969
  %v983 = vmul.f32 %v952, %v969
  %v984 = vmul.f32 %v953, %v969
  %v985 = vmul.f32 %v954, %v974
  %v986 = vmul.f32 %v955, %v974
  %v987 = vmul.f32 %v956, %v974
  %v988 = vmul.f32 %v957, %v974
  %v989 = vmul.f32 %v958, %v979
  %v990 = vmul.f32 %v959, %v979
  %v991 = vmul.f32 %v960, %v979
  %v992 = vmul.f32 %v961, %v979
  %v993 = vadd.f32 %v937, %v981
  %v994 = vadd.f32 %v938, %v982
  %v995 = vadd.f32 %v939, %v983
  %v996 = vadd.f32 %v940, %v984
  %v997 = vadd.f32 %v941, %v985
  %v998 = vadd.f32 %v942, %v986
  %v999 = vadd.f32 %v943, %v987
  %v1000 = vadd.f32 %v944, %v988
  %v1001 = vadd.f32 %v945, %v989
  %v1002 = vadd.f32 %v946, %v990
  %v1003 = vadd.f32 %v947, %v991
  %v1004 = vadd.f32 %v948, %v992
  %v1005 = vadd.f32 %v993, %v994
  %v1006 = vadd.f32 %v1005, %v995
  %v1007 = vadd.f32 %v1006, %v996
  %1008 = vadd.xlane.f32.xlu0 %v1007
  %v1009 = vpop.xlane.xlu0 %1008
  %v1010 = vadd.f32 %v997, %v998
  %v1011 = vadd.f32 %v1010, %v999
  %v1012 = vadd.f32 %v1011, %v1000
  %1013 = vadd.xlane.f32.xlu0 %v1012
  %v1014 = vpop.xlane.xlu0 %1013
  %vm1015 = vcmask 1040384
  %v1016 = vsel %vm1015, %v1001, 0.0
  %v1017 = vsel %vm1015, %v1002, 0.0
  %v1018 = vadd.f32 %v1016, %v1017
  %v1019 = vsel %vm1015, %v1003, 0.0
  %v1020 = vadd.f32 %v1018, %v1019
  %v1021 = vsel %vm1015, %v1004, 0.0
  %v1022 = vadd.f32 %v1020, %v1021
  %1023 = vadd.xlane.f32.xlu0 %v1022
  %v1024 = vpop.xlane.xlu0 %1023
  %v1025 = vmul.f32 %v1009, 0.001953125
  %v1026 = vmul.f32 %v1014, 0.001953125
  %v1027 = vmul.f32 %v1024, 0.001953125
  %v1028 = vsub.f32 %v993, %v1025
  %v1029 = vsub.f32 %v994, %v1025
  %v1030 = vsub.f32 %v995, %v1025
  %v1031 = vsub.f32 %v996, %v1025
  %v1032 = vsub.f32 %v997, %v1026
  %v1033 = vsub.f32 %v998, %v1026
  %v1034 = vsub.f32 %v999, %v1026
  %v1035 = vsub.f32 %v1000, %v1026
  %v1036 = vsub.f32 %v1001, %v1027
  %v1037 = vsub.f32 %v1002, %v1027
  %v1038 = vsub.f32 %v1003, %v1027
  %v1039 = vsub.f32 %v1004, %v1027
  %v1040 = vmul.f32 %v1028, %v1028
  %v1041 = vmul.f32 %v1029, %v1029
  %v1042 = vmul.f32 %v1030, %v1030
  %v1043 = vmul.f32 %v1031, %v1031
  %v1044 = vmul.f32 %v1032, %v1032
  %v1045 = vmul.f32 %v1033, %v1033
  %v1046 = vmul.f32 %v1034, %v1034
  %v1047 = vmul.f32 %v1035, %v1035
  %v1048 = vmul.f32 %v1036, %v1036
  %v1049 = vmul.f32 %v1037, %v1037
  %v1050 = vmul.f32 %v1038, %v1038
  %v1051 = vmul.f32 %v1039, %v1039
  %v1052 = vadd.f32 %v1040, %v1041
  %v1053 = vadd.f32 %v1052, %v1042
  %v1054 = vadd.f32 %v1053, %v1043
  %1055 = vadd.xlane.f32.xlu0 %v1054
  %v1056 = vpop.xlane.xlu0 %1055
  %v1057 = vadd.f32 %v1044, %v1045
  %v1058 = vadd.f32 %v1057, %v1046
  %v1059 = vadd.f32 %v1058, %v1047
  %1060 = vadd.xlane.f32.xlu0 %v1059
  %v1061 = vpop.xlane.xlu0 %1060
  %v1062 = vsel %vm1015, %v1048, 0.0
  %v1063 = vsel %vm1015, %v1049, 0.0
  %v1064 = vadd.f32 %v1062, %v1063
  %v1065 = vsel %vm1015, %v1050, 0.0
  %v1066 = vadd.f32 %v1064, %v1065
  %v1067 = vsel %vm1015, %v1051, 0.0
  %v1068 = vadd.f32 %v1066, %v1067
  %1069 = vadd.xlane.f32.xlu0 %v1068
  %v1070 = vpop.xlane.xlu0 %1069
  %v1071 = vmul.f32 %v1056, 0.001953125
  %v1072 = vmul.f32 %v1061, 0.001953125
  %v1073 = vmul.f32 %v1070, 0.001953125
  %v1074 = vadd.f32 %v1071, 1e-05
  %v1075 = vadd.f32 %v1072, 1e-05
  %v1076 = vadd.f32 %v1073, 1e-05
  %v1077 = vrsqrt.pop %v1074
  %v1078 = vrsqrt.pop %v1075
  %v1079 = vrsqrt.pop %v1076
  %s1080 = scalar_lea.vmem %s0, 432
  %v1081 = vld [vmem:[%s1080] sm:$0xff]
  %v1082 = vld [vmem:[%s1080 + $0x8] sm:$0xff]
  %v1083 = vld [vmem:[%s1080 + $0x10] sm:$0x1]
  %v1084 = vmul.f32 %v1077, %v1081
  %v1085 = vmul.f32 %v1078, %v1082
  %v1086 = vmul.f32 %v1079, %v1083
  %1088 = vset.pattern.permute.xlu0 0
  %1089 = vperm.xlu0 %1088, %v1084
  %v1090 = vpop.permute.xlu0 %1089
  %1093 = vset.pattern.permute.xlu0 0
  %1094 = vperm.xlu0 %1093, %v1085
  %v1095 = vpop.permute.xlu0 %1094
  %1098 = vset.pattern.permute.xlu0 0
  %1099 = vperm.xlu0 %1098, %v1086
  %v1100 = vpop.permute.xlu0 %1099
  %v1102 = vmul.f32 %v1028, %v1090
  %v1103 = vmul.f32 %v1029, %v1090
  %v1104 = vmul.f32 %v1030, %v1090
  %v1105 = vmul.f32 %v1031, %v1090
  %v1106 = vmul.f32 %v1032, %v1095
  %v1107 = vmul.f32 %v1033, %v1095
  %v1108 = vmul.f32 %v1034, %v1095
  %v1109 = vmul.f32 %v1035, %v1095
  %v1110 = vmul.f32 %v1036, %v1100
  %v1111 = vmul.f32 %v1037, %v1100
  %v1112 = vmul.f32 %v1038, %v1100
  %v1113 = vmul.f32 %v1039, %v1100
  %s1114 = scalar_lea.vmem %s0, 456
  %v1115 = vld [vmem:[%s1114] sm:$0xff]
  %v1116 = vld [vmem:[%s1114 + $0x8] sm:$0xff]
  %v1117 = vld [vmem:[%s1114 + $0x10] sm:$0x1]
  %1119 = vset.pattern.permute.xlu0 0
  %1120 = vperm.xlu0 %1119, %v1115
  %v1121 = vpop.permute.xlu0 %1120
  %1124 = vset.pattern.permute.xlu0 0
  %1125 = vperm.xlu0 %1124, %v1116
  %v1126 = vpop.permute.xlu0 %1125
  %1129 = vset.pattern.permute.xlu0 0
  %1130 = vperm.xlu0 %1129, %v1117
  %v1131 = vpop.permute.xlu0 %1130
  %v1133 = vadd.f32 %v1102, %v1121
  %v1134 = vadd.f32 %v1103, %v1121
  %v1135 = vadd.f32 %v1104, %v1121
  %v1136 = vadd.f32 %v1105, %v1121
  %v1137 = vadd.f32 %v1106, %v1126
  %v1138 = vadd.f32 %v1107, %v1126
  %v1139 = vadd.f32 %v1108, %v1126
  %v1140 = vadd.f32 %v1109, %v1126
  %v1141 = vadd.f32 %v1110, %v1131
  %v1142 = vadd.f32 %v1111, %v1131
  %v1143 = vadd.f32 %v1112, %v1131
  %v1144 = vadd.f32 %v1113, %v1131
  %v1145 = vmax.f32 %v1133, 0.0
  %v1146 = vmax.f32 %v1134, 0.0
  %v1147 = vmax.f32 %v1135, 0.0
  %v1148 = vmax.f32 %v1136, 0.0
  %v1149 = vmax.f32 %v1137, 0.0
  %v1150 = vmax.f32 %v1138, 0.0
  %v1151 = vmax.f32 %v1139, 0.0
  %v1152 = vmax.f32 %v1140, 0.0
  %v1153 = vmax.f32 %v1141, 0.0
  %v1154 = vmax.f32 %v1142, 0.0
  %v1155 = vmax.f32 %v1143, 0.0
  %v1156 = vmax.f32 %v1144, 0.0
  %1157 = vst [vmem:[%s2] sm:$0xff] %v1145
  %1158 = vst [vmem:[%s2 + $0x8] sm:$0xff] %v1146
  %1159 = vst [vmem:[%s2 + $0x10] sm:$0xff] %v1147
  %1160 = vst [vmem:[%s2 + $0x18] sm:$0xff] %v1148
  %1161 = vst [vmem:[%s2 + $0x20] sm:$0xff] %v1149
  %1162 = vst [vmem:[%s2 + $0x28] sm:$0xff] %v1150
  %1163 = vst [vmem:[%s2 + $0x30] sm:$0xff] %v1151
  %1164 = vst [vmem:[%s2 + $0x38] sm:$0xff] %v1152
  %1165 = vst [vmem:[%s2 + $0x40] sm:$0x1] %v1153
  %1166 = vst [vmem:[%s2 + $0x48] sm:$0x1] %v1154
  %1167 = vst [vmem:[%s2 + $0x50] sm:$0x1] %v1155
  %1168 = vst [vmem:[%s2 + $0x58] sm:$0x1] %v1156
  // Predicated region
  $region10: #{deconv_block.1} parent=0 // pred_check
    _
  $region11: #{deconv_block.1} parent=0 // pred_check_branch
    %1170 = sbr.rel (0) target = $region13
  $region12: #{deconv_block.1} parent=0 // pred_region
    _
  $region13: #{deconv_block.1} parent=0 // pred_fallthru
    _
  // Predicated region
  $region14: #{deconv_block.1} parent=0 // pred_check
    _
  $region15: #{deconv_block.1} parent=0 // pred_check_branch
    %1172 = sbr.rel (0) target = $region17
  $region16: #{deconv_block.1} parent=0 // pred_region
    _
  $region17: #{deconv_block.1} parent=0 // pred_fallthru
    _

</llo_original>
